<compile_context>
chip_gen: v5e
topology: v5e:2x2
jax: 0.10.0
libtpu: 0.0.40
codegen_flags: <defaults>
</compile_context>

<pallas_src>
import numpy as np
import jax
import jax.numpy as jnp
from jax.experimental import pallas as pl
from jax.experimental.pallas import tpu as pltpu


def _pad8(c):
    return max(8, ((c + 7) // 8) * 8)


# -----------------------------------------------------------------------------
# Fused Pallas kernel (grid over batch; weights + intermediates resident in VMEM)
# -----------------------------------------------------------------------------
def _make_vae_kernel(H, W, bn, CP):
    HW = H * W
    PAD = W + 1      # max |spatial shift| of a 3x3 tap in the flat (h*W + w) index

    def kernel(x_ref, eps_ref, cm_ref,
               w0_ref, b0_ref, w1_ref,
               mw_ref, mvb_ref, ew_ref, eb_ref,
               w2_ref, w3_ref, b3_ref,
               out_ref, mv_ref,
               pad_ref, hs_ref, d0_ref):

        def conv_same(act, w_ref, bias, relu):
            """3x3 'same' conv of a (CP, H*W) slab as ONE im2col bf16 MXU matmul."""
            # zero-padded slab -> each tap's shifted copy is a static window read
            pad_ref[:, PAD:PAD + HW] = act
            taps = []
            for t in range(9):
                dr, dc = t // 3 - 1, t % 3 - 1
                s = dr * W + dc
                sh = pad_ref[:, PAD + s:PAD + s + HW]
                if dc == -1:                     # mask out left column boundary
                    sh = sh * cm_ref[0]
                elif dc == 1:                    # mask out right column boundary
                    sh = sh * cm_ref[1]
                taps.append(sh)
            stack = jnp.concatenate(taps, axis=0).astype(jnp.bfloat16)   # (9*CP, HW)
            y = jnp.dot(w_ref[...], stack, preferred_element_type=jnp.float32)
            if bias is not None:
                y = y + bias
            return jnp.maximum(y, 0.0) if relu else y

        # zero the halo of the padded slab once (interior is overwritten per layer)
        pad_ref[...] = jnp.zeros_like(pad_ref)

        # ---------------- encoder ----------------
        h = conv_same(x_ref[0], w0_ref, b0_ref[...], relu=True)          # (CP, HW)
        h = conv_same(h, w1_ref, None, relu=True)                        # (CP, HW)

        # (B, C*H, W) view: relayout (CP, H*W) -> (H*CP, W) with aligned slice stores
        for hh in range(H):
            hs_ref[hh * CP:(hh + 1) * CP, :] = h[:, hh * W:(hh + 1) * W]

        # stacked means/vars 1x1 conv: one matmul
        mv = jnp.dot(mw_ref[...], hs_ref[...].astype(jnp.bfloat16),
                     preferred_element_type=jnp.float32) + mvb_ref[...]  # (2*bn, W)
        mv_ref[0] = mv

        # ---------------- sampler:  z = mean + exp(logvar) * eps ----------------
        z = mv[:bn] + jnp.exp(mv[bn:]) * eps_ref[0]                      # (bn, W)

        # ---------------- decoder ----------------
        ez = jnp.dot(ew_ref[...], z.astype(jnp.bfloat16),
                     preferred_element_type=jnp.float32) + eb_ref[...]   # (H*CP, W)
        # view back to conv layout (CP, H*W)
        for hh in range(H):
            d0_ref[:, hh * W:(hh + 1) * W] = ez[hh * CP:(hh + 1) * CP, :]

        d = conv_same(d0_ref[...], w2_ref, None, relu=True)              # (CP, HW)
        d = conv_same(d, w3_ref, b3_ref[...], relu=False)                # (CP, HW)
        out_ref[0] = d

    return kernel


# -----------------------------------------------------------------------------
# Host-side weight / constant preparation
# -----------------------------------------------------------------------------
def _col_masks(H, W):
    """m[0]: validity of the (w-1) column tap; m[1]: validity of the (w+1) tap."""
    m = np.zeros((2, 1, H * W), np.float32)
    for h in range(H):
        for w in range(W):
            m[0, 0, h * W + w] = 1.0 if w >= 1 else 0.0
            m[1, 0, h * W + w] = 1.0 if w <= W - 2 else 0.0
    return m


def _pack_conv(w, cp):
    """(Cout, Cin, 3, 3) conv weight -> (CP, 9*CP) bf16 im2col weight, tap-major."""
    cout, cin, kh, kw = w.shape
    wt = jnp.transpose(w.astype(jnp.float32), (0, 2, 3, 1)).reshape(cout, kh * kw, cin)
    wp = jnp.zeros((cp, kh * kw, cp), jnp.float32).at[:cout, :, :cin].set(wt)
    return wp.reshape(cp, kh * kw * cp).astype(jnp.bfloat16)


def _pad_bias(b, cp):
    return jnp.zeros((cp, 1), jnp.float32).at[:b.shape[0], 0].set(b.astype(jnp.float32))


def rs_weights(rates, scales, KH, KW):
    """weights[i, j] = sin(rates[i,j]*mesh_t + scales[i,j]*mesh_f) * hanning window."""
    t = np.arange(KW, dtype=np.float32)
    f = np.arange(KH, dtype=np.float32)
    mesh_t, mesh_f = np.meshgrid(t, f)                       # each (KH, KW)
    ww = np.outer(np.hanning(KH), np.hanning(KW)).astype(np.float32)
    mesh_t = jnp.asarray(mesh_t, jnp.float32)
    mesh_f = jnp.asarray(mesh_f, jnp.float32)
    ww = jnp.asarray(ww, jnp.float32)
    return (jnp.sin(rates[:, :, None, None] * mesh_t[None, None]
                    + scales[:, :, None, None] * mesh_f[None, None])
            * ww[None, None])


def transpose_to_conv(w_t):
    """ConvTranspose2d weight (Cin, Cout, KH, KW) -> equivalent conv weight
    (stride-1, padding (K-1)/2 transpose conv == 'same' conv with flipped weights)."""
    return jnp.transpose(jnp.flip(w_t, axis=(-2, -1)), (1, 0, 2, 3))


def init_params(key, cfg):
    KH, KW = cfg["kernel"]
    in_ch, out_ch = cfg["in_channels"], cfg["out_channels"]
    bn, H = cfg["bn_size"], cfg["input_h"]
    cnn_out_dim = out_ch[-1] * H
    dec_in = out_ch[::-1]       # decoder in_channels
    dec_out = in_ch[::-1]       # decoder out_channels
    ks = jax.random.split(key, 12)
    g = lambda k, shape: 0.1 * jax.random.normal(k, shape, jnp.float32)
    return {
        # encoder
        "enc_conv0_w": g(ks[0], (out_ch[0], in_ch[0], KH, KW)),
        "enc_conv0_b": g(ks[1], (out_ch[0],)),
        "enc_rs_rates": jax.random.uniform(ks[2], (out_ch[-1], in_ch[-1]), jnp.float32),
        "enc_rs_scales": jnp.zeros((out_ch[-1], in_ch[-1]), jnp.float32),
        "means_w": g(ks[3], (bn, cnn_out_dim)),
        "means_b": g(ks[4], (bn,)),
        "vars_w": g(ks[5], (bn, cnn_out_dim)),
        "vars_b": g(ks[6], (bn,)),
        # decoder
        "expand_w": g(ks[7], (H * dec_in[0], bn)),
        "expand_b": g(ks[8], (H * dec_in[0],)),
        "dec_rs_rates": jax.random.uniform(ks[9], (dec_in[0], dec_out[0]), jnp.float32),
        "dec_rs_scales": jnp.zeros((dec_in[0], dec_out[0]), jnp.float32),
        "dec_ct_w": g(ks[10], (dec_in[1], dec_out[1], KH, KW)),
        "dec_ct_b": g(ks[11], (dec_out[1],)),
    }


# -----------------------------------------------------------------------------
# Forward pass (single fused Pallas kernel, batch-parallel grid)
# -----------------------------------------------------------------------------
def forward_impl(x, params, eps):
    B, cin0, H, W = x.shape
    KH, KW = params["enc_conv0_w"].shape[2:4]
    assert (KH, KW) == (3, 3)
    HW = H * W
    bn = params["means_w"].shape[0]
    c1 = params["enc_conv0_w"].shape[0]
    c2 = params["means_w"].shape[1] // H
    dec_c0 = params["expand_w"].shape[0] // H
    dec_c1 = params["dec_ct_w"].shape[0]
    cfin = params["dec_ct_w"].shape[1]
    CP = _pad8(max(cin0, c1, c2, dec_c0, dec_c1, cfin))   # common conv channel pad

    # activations / noise (lane-dense (C, H*W) per batch element)
    x2 = jnp.zeros((B, CP, HW), jnp.float32).at[:, :cin0, :].set(
        x.astype(jnp.float32).reshape(B, cin0, HW))
    eps2 = eps.astype(jnp.float32)                                   # (B, bn, W)
    cmasks = jnp.asarray(_col_masks(H, W))                           # (2, 1, HW)

    # conv weights in im2col layout (CP, 9*CP), bf16
    w0 = _pack_conv(params["enc_conv0_w"], CP)
    b0 = _pad_bias(params["enc_conv0_b"], CP)
    w1 = _pack_conv(rs_weights(params["enc_rs_rates"], params["enc_rs_scales"], KH, KW), CP)
    w2 = _pack_conv(transpose_to_conv(
        rs_weights(params["dec_rs_rates"], params["dec_rs_scales"], KH, KW)), CP)
    w3 = _pack_conv(transpose_to_conv(params["dec_ct_w"]), CP)
    b3 = _pad_bias(params["dec_ct_b"], CP)

    # stacked means/vars 1x1 weights, reordered to the kernel's h-major (h*CP + c) rows
    mw = jnp.concatenate([params["means_w"], params["vars_w"]], axis=0)      # (2bn, c2*H)
    mwr = jnp.transpose(mw.reshape(2 * bn, c2, H), (0, 2, 1))                # (2bn, H, c2)
    mw_k = (jnp.zeros((2 * bn, H, CP), jnp.float32).at[:, :, :c2].set(mwr)
            .reshape(2 * bn, H * CP).astype(jnp.bfloat16))
    mvb = jnp.concatenate([params["means_b"], params["vars_b"]],
                          axis=0).astype(jnp.float32).reshape(2 * bn, 1)

    # decoder expand 1x1 weights, h-major rows (h*CP + c); bias NOT pre-broadcast
    ew = jnp.transpose(params["expand_w"].reshape(dec_c0, H, bn), (1, 0, 2))  # (H, dec_c0, bn)
    ew_k = (jnp.zeros((H, CP, bn), jnp.float32).at[:, :dec_c0, :].set(ew)
            .reshape(H * CP, bn).astype(jnp.bfloat16))
    eb = jnp.transpose(params["expand_b"].reshape(dec_c0, H), (1, 0))         # (H, dec_c0)
    eb_k = (jnp.zeros((H, CP), jnp.float32).at[:, :dec_c0].set(eb)
            .reshape(H * CP, 1))

    kernel = _make_vae_kernel(H, W, bn, CP)

    def batched_spec(a):
        return pl.BlockSpec((1,) + tuple(a.shape[1:]), lambda b: (b, 0, 0))

    def full_spec(a):
        nd = a.ndim
        return pl.BlockSpec(tuple(a.shape), lambda b: (0,) * nd)

    inputs = (x2, eps2, cmasks, w0, b0, w1, mw_k, mvb, ew_k, eb_k, w2, w3, b3)
    in_specs = [batched_spec(x2), batched_spec(eps2)] + [full_spec(a) for a in inputs[2:]]

    flops = 2 * B * (4 * CP * 9 * CP * HW + 2 * bn * H * CP * W + H * CP * bn * W)
    bytes_accessed = int(sum(a.size * a.dtype.itemsize for a in inputs)
                         + 4 * B * (CP * HW + 2 * bn * W))

    out2, mv = pl.pallas_call(
        kernel,
        grid=(B,),
        out_shape=(jax.ShapeDtypeStruct((B, CP, HW), jnp.float32),
                   jax.ShapeDtypeStruct((B, 2 * bn, W), jnp.float32)),
        in_specs=in_specs,
        out_specs=(pl.BlockSpec((1, CP, HW), lambda b: (b, 0, 0)),
                   pl.BlockSpec((1, 2 * bn, W), lambda b: (b, 0, 0))),
        scratch_shapes=[pltpu.VMEM((CP, HW + 2 * (W + 1)), jnp.float32),   # padded conv slab
                        pltpu.VMEM((H * CP, W), jnp.float32),              # (C*H, W) view
                        pltpu.VMEM((CP, HW), jnp.float32)],                # expand -> conv view
        compiler_params=pltpu.CompilerParams(
            dimension_semantics=("parallel",),
            vmem_limit_bytes=32 * 1024 * 1024),
        cost_estimate=pl.CostEstimate(flops=int(flops),
                                      transcendentals=int(B * bn * W),
                                      bytes_accessed=bytes_accessed),
    )(*inputs)

    out = out2[:, :cfin, :].reshape(B, cfin, H, W)
    means = mv[:, :bn, :]
    logvars = mv[:, bn:, :]
    return out, means, logvars


_forward_jit = jax.jit(forward_impl)


def forward(x, params, cfg, eps):
    # TODO(synk): torch.randn inside latentSamplerCNN is replaced by host-supplied eps.
    out, means, logvars = _forward_jit(x, params, eps)
    w_change = x.shape[3]   # stride-1 "same" convs preserve width
    return out, (means, logvars, w_change)


# ----------------------------- pure-JAX reference ----------------------------
def _ref_conv2d(x, w, b, relu):
    ph, pw = (w.shape[2] - 1) // 2, (w.shape[3] - 1) // 2
    y = jax.lax.conv_general_dilated(
        x, w, (1, 1), [(ph, ph), (pw, pw)],
        dimension_numbers=("NCHW", "OIHW", "NCHW"))
    y = y + b[None, :, None, None]
    return jnp.maximum(y, 0.0) if relu else y


def _ref_conv1d(x, w, b):
    return jnp.einsum("oc,bcw->bow", w, x) + b[None, :, None]


def ref_forward(x, params, cfg, eps):
    KH, KW = cfg["kernel"]
    h = _ref_conv2d(x, params["enc_conv0_w"], params["enc_conv0_b"], True)
    w_rs_enc = rs_weights(params["enc_rs_rates"], params["enc_rs_scales"], KH, KW)
    h = _ref_conv2d(h, w_rs_enc, jnp.zeros((w_rs_enc.shape[0],)), True)
    B, C, H, W = h.shape
    h = h.reshape(B, C * H, W)
    means = _ref_conv1d(h, params["means_w"], params["means_b"])
    logvars = _ref_conv1d(h, params["vars_w"], params["vars_b"])
    z = means + jnp.exp(logvars) * eps
    d = _ref_conv1d(z, params["expand_w"], params["expand_b"])
    d = d.reshape(B, cfg["out_channels"][-1], cfg["input_h"], W)
    w0 = transpose_to_conv(rs_weights(params["dec_rs_rates"], params["dec_rs_scales"], KH, KW))
    d = _ref_conv2d(d, w0, jnp.zeros((w0.shape[0],)), True)
    w1 = transpose_to_conv(params["dec_ct_w"])
    d = _ref_conv2d(d, w1, params["dec_ct_b"], False)
    return d, (means, logvars, W)


# -----------------------------------------------------------------------------
if __name__ == "__main__":
    cfg = dict(input_h=16, input_w=16, in_channels=(1, 4), out_channels=(4, 8),
               kernel=(3, 3), bn_size=16)
    B = 2
    key = jax.random.PRNGKey(0)
    k_x, k_eps, k_p = jax.random.split(key, 3)
    params = init_params(k_p, cfg)
    x = jax.random.normal(k_x, (B, cfg["in_channels"][0], cfg["input_h"], cfg["input_w"]),
                          jnp.float32)
    eps = jax.random.normal(k_eps, (B, cfg["bn_size"], cfg["input_w"]), jnp.float32)

    out, (means, logvars, w_change) = forward(x, params, cfg, eps)
    jax.block_until_ready(out)

    ref_out, (ref_m, ref_v, _) = ref_forward(x, params, cfg, eps)
    assert out.shape == (B, cfg["in_channels"][0], cfg["input_h"], cfg["input_w"])
    assert int(w_change) == cfg["input_w"]
    # bf16 MXU inputs (f32 accumulation) -> slightly looser tolerances than pure f32
    assert np.allclose(np.asarray(means), np.asarray(ref_m), atol=2e-2, rtol=2e-2)
    assert np.allclose(np.asarray(logvars), np.asarray(ref_v), atol=2e-2, rtol=2e-2)
    assert np.allclose(np.asarray(out), np.asarray(ref_out), atol=5e-2, rtol=5e-2)
    print("KERNEL_OK")
</pallas_src>

<mosaic_0001>
module attributes {stable_mosaic.version = 11 : i64} {
  func.func @kernel(%arg0: i32, %arg1: memref<1x8x256xf32, #tpu.memory_space<vmem>>, %arg2: memref<1x16x16xf32, #tpu.memory_space<vmem>>, %arg3: memref<2x1x256xf32, #tpu.memory_space<vmem>>, %arg4: memref<8x72xbf16, #tpu.memory_space<vmem>>, %arg5: memref<8x1xf32, #tpu.memory_space<vmem>>, %arg6: memref<8x72xbf16, #tpu.memory_space<vmem>>, %arg7: memref<32x128xbf16, #tpu.memory_space<vmem>>, %arg8: memref<32x1xf32, #tpu.memory_space<vmem>>, %arg9: memref<128x16xbf16, #tpu.memory_space<vmem>>, %arg10: memref<128x1xf32, #tpu.memory_space<vmem>>, %arg11: memref<8x72xbf16, #tpu.memory_space<vmem>>, %arg12: memref<8x72xbf16, #tpu.memory_space<vmem>>, %arg13: memref<8x1xf32, #tpu.memory_space<vmem>>, %arg14: memref<1x8x256xf32, #tpu.memory_space<vmem>>, %arg15: memref<1x32x16xf32, #tpu.memory_space<vmem>>, %arg16: memref<8x290xf32, #tpu.memory_space<vmem>>, %arg17: memref<128x16xf32, #tpu.memory_space<vmem>>, %arg18: memref<8x256xf32, #tpu.memory_space<vmem>>) attributes {dimension_semantics = [#tpu.dimension_semantics<parallel>], iteration_bounds = array<i64: 2>, scalar_prefetch = 0 : i64, scratch_operands = 3 : i64, tpu.core_type = #tpu.core_type<tc>, window_params = [{transform_indices = @transform_0, window_bounds = array<i64: 1, 8, 256>}, {transform_indices = @transform_1, window_bounds = array<i64: 1, 16, 16>}, {pipeline_mode = #tpu.pipeline_mode<synchronous>, transform_indices = @transform_2, window_bounds = array<i64: 2, 1, 256>}, {pipeline_mode = #tpu.pipeline_mode<synchronous>, transform_indices = @transform_3, window_bounds = array<i64: 8, 72>}, {pipeline_mode = #tpu.pipeline_mode<synchronous>, transform_indices = @transform_4, window_bounds = array<i64: 8, 1>}, {pipeline_mode = #tpu.pipeline_mode<synchronous>, transform_indices = @transform_5, window_bounds = array<i64: 8, 72>}, {pipeline_mode = #tpu.pipeline_mode<synchronous>, transform_indices = @transform_6, window_bounds = array<i64: 32, 128>}, {pipeline_mode = #tpu.pipeline_mode<synchronous>, transform_indices = @transform_7, window_bounds = array<i64: 32, 1>}, {pipeline_mode = #tpu.pipeline_mode<synchronous>, transform_indices = @transform_8, window_bounds = array<i64: 128, 16>}, {pipeline_mode = #tpu.pipeline_mode<synchronous>, transform_indices = @transform_9, window_bounds = array<i64: 128, 1>}, {pipeline_mode = #tpu.pipeline_mode<synchronous>, transform_indices = @transform_10, window_bounds = array<i64: 8, 72>}, {pipeline_mode = #tpu.pipeline_mode<synchronous>, transform_indices = @transform_11, window_bounds = array<i64: 8, 72>}, {pipeline_mode = #tpu.pipeline_mode<synchronous>, transform_indices = @transform_12, window_bounds = array<i64: 8, 1>}, {transform_indices = @transform_13, window_bounds = array<i64: 1, 8, 256>}, {transform_indices = @transform_14, window_bounds = array<i64: 1, 32, 16>}]} {
    %cst = arith.constant 0.000000e+00 : f32
    %0 = vector.broadcast %cst : f32 to vector<8x290xf32>
    %c0 = arith.constant 0 : index
    %c0_0 = arith.constant 0 : index
    %1 = vector.load %arg16[%c0, %c0_0] : memref<8x290xf32, #tpu.memory_space<vmem>>, vector<8x290xf32>
    tpu.vector_store %arg16[%c0, %c0_0], %0 {strides = array<i32>} : memref<8x290xf32, #tpu.memory_space<vmem>>, vector<8x290xf32>,
    %c0_1 = arith.constant 0 : index
    %c0_2 = arith.constant 0 : index
    %c0_3 = arith.constant 0 : index
    %2 = vector.load %arg1[%c0_1, %c0_2, %c0_3] : memref<1x8x256xf32, #tpu.memory_space<vmem>>, vector<1x8x256xf32>
    %3 = vector.shape_cast %2 : vector<1x8x256xf32> to vector<8x256xf32>
    %c0_4 = arith.constant 0 : index
    %c0_5 = arith.constant 0 : index
    %4 = vector.load %arg5[%c0_4, %c0_5] : memref<8x1xf32, #tpu.memory_space<vmem>>, vector<8x1xf32>
    %c0_6 = arith.constant 0 : index
    %c17 = arith.constant 17 : index
    %5 = vector.load %arg16[%c0_6, %c17] : memref<8x290xf32, #tpu.memory_space<vmem>>, vector<8x256xf32>
    tpu.vector_store %arg16[%c0_6, %c17], %3 {strides = array<i32>} : memref<8x290xf32, #tpu.memory_space<vmem>>, vector<8x256xf32>,
    %c0_7 = arith.constant 0 : index
    %c0_8 = arith.constant 0 : index
    %6 = vector.load %arg16[%c0_7, %c0_8] : memref<8x290xf32, #tpu.memory_space<vmem>>, vector<8x256xf32>
    %c0_9 = arith.constant 0 : index
    %c0_10 = arith.constant 0 : index
    %c0_11 = arith.constant 0 : index
    %7 = vector.load %arg3[%c0_9, %c0_10, %c0_11] : memref<2x1x256xf32, #tpu.memory_space<vmem>>, vector<1x1x256xf32>
    %8 = vector.shape_cast %7 : vector<1x1x256xf32> to vector<1x256xf32>
    %9 = vector.broadcast %8 : vector<1x256xf32> to vector<8x256xf32>
    %10 = arith.mulf %6, %9 : vector<8x256xf32>
    %c0_12 = arith.constant 0 : index
    %c1 = arith.constant 1 : index
    %11 = vector.load %arg16[%c0_12, %c1] : memref<8x290xf32, #tpu.memory_space<vmem>>, vector<8x256xf32>
    %c0_13 = arith.constant 0 : index
    %c2 = arith.constant 2 : index
    %12 = vector.load %arg16[%c0_13, %c2] : memref<8x290xf32, #tpu.memory_space<vmem>>, vector<8x256xf32>
    %c1_14 = arith.constant 1 : index
    %c0_15 = arith.constant 0 : index
    %c0_16 = arith.constant 0 : index
    %13 = vector.load %arg3[%c1_14, %c0_15, %c0_16] : memref<2x1x256xf32, #tpu.memory_space<vmem>>, vector<1x1x256xf32>
    %14 = vector.shape_cast %13 : vector<1x1x256xf32> to vector<1x256xf32>
    %15 = vector.broadcast %14 : vector<1x256xf32> to vector<8x256xf32>
    %16 = arith.mulf %12, %15 : vector<8x256xf32>
    %c0_17 = arith.constant 0 : index
    %c16 = arith.constant 16 : index
    %17 = vector.load %arg16[%c0_17, %c16] : memref<8x290xf32, #tpu.memory_space<vmem>>, vector<8x256xf32>
    %c0_18 = arith.constant 0 : index
    %c0_19 = arith.constant 0 : index
    %c0_20 = arith.constant 0 : index
    %18 = vector.load %arg3[%c0_18, %c0_19, %c0_20] : memref<2x1x256xf32, #tpu.memory_space<vmem>>, vector<1x1x256xf32>
    %19 = vector.shape_cast %18 : vector<1x1x256xf32> to vector<1x256xf32>
    %20 = vector.broadcast %19 : vector<1x256xf32> to vector<8x256xf32>
    %21 = arith.mulf %17, %20 : vector<8x256xf32>
    %c0_21 = arith.constant 0 : index
    %c17_22 = arith.constant 17 : index
    %22 = vector.load %arg16[%c0_21, %c17_22] : memref<8x290xf32, #tpu.memory_space<vmem>>, vector<8x256xf32>
    %c0_23 = arith.constant 0 : index
    %c18 = arith.constant 18 : index
    %23 = vector.load %arg16[%c0_23, %c18] : memref<8x290xf32, #tpu.memory_space<vmem>>, vector<8x256xf32>
    %c1_24 = arith.constant 1 : index
    %c0_25 = arith.constant 0 : index
    %c0_26 = arith.constant 0 : index
    %24 = vector.load %arg3[%c1_24, %c0_25, %c0_26] : memref<2x1x256xf32, #tpu.memory_space<vmem>>, vector<1x1x256xf32>
    %25 = vector.shape_cast %24 : vector<1x1x256xf32> to vector<1x256xf32>
    %26 = vector.broadcast %25 : vector<1x256xf32> to vector<8x256xf32>
    %27 = arith.mulf %23, %26 : vector<8x256xf32>
    %c0_27 = arith.constant 0 : index
    %c32 = arith.constant 32 : index
    %28 = vector.load %arg16[%c0_27, %c32] : memref<8x290xf32, #tpu.memory_space<vmem>>, vector<8x256xf32>
    %c0_28 = arith.constant 0 : index
    %c0_29 = arith.constant 0 : index
    %c0_30 = arith.constant 0 : index
    %29 = vector.load %arg3[%c0_28, %c0_29, %c0_30] : memref<2x1x256xf32, #tpu.memory_space<vmem>>, vector<1x1x256xf32>
    %30 = vector.shape_cast %29 : vector<1x1x256xf32> to vector<1x256xf32>
    %31 = vector.broadcast %30 : vector<1x256xf32> to vector<8x256xf32>
    %32 = arith.mulf %28, %31 : vector<8x256xf32>
    %c0_31 = arith.constant 0 : index
    %c33 = arith.constant 33 : index
    %33 = vector.load %arg16[%c0_31, %c33] : memref<8x290xf32, #tpu.memory_space<vmem>>, vector<8x256xf32>
    %c0_32 = arith.constant 0 : index
    %c34 = arith.constant 34 : index
    %34 = vector.load %arg16[%c0_32, %c34] : memref<8x290xf32, #tpu.memory_space<vmem>>, vector<8x256xf32>
    %c1_33 = arith.constant 1 : index
    %c0_34 = arith.constant 0 : index
    %c0_35 = arith.constant 0 : index
    %35 = vector.load %arg3[%c1_33, %c0_34, %c0_35] : memref<2x1x256xf32, #tpu.memory_space<vmem>>, vector<1x1x256xf32>
    %36 = vector.shape_cast %35 : vector<1x1x256xf32> to vector<1x256xf32>
    %37 = vector.broadcast %36 : vector<1x256xf32> to vector<8x256xf32>
    %38 = arith.mulf %34, %37 : vector<8x256xf32>
    %39 = tpu.concatenate %10, %11, %16, %21, %22, %27, %32, %33, %38 in 0 : vector<8x256xf32>, vector<8x256xf32>, vector<8x256xf32>, vector<8x256xf32>, vector<8x256xf32>, vector<8x256xf32>, vector<8x256xf32>, vector<8x256xf32>, vector<8x256xf32> -> vector<72x256xf32>
    %40 = arith.truncf %39 : vector<72x256xf32> to vector<72x256xbf16>
    %c0_36 = arith.constant 0 : index
    %c0_37 = arith.constant 0 : index
    %41 = vector.load %arg4[%c0_36, %c0_37] : memref<8x72xbf16, #tpu.memory_space<vmem>>, vector<8x72xbf16>
    %cst_38 = arith.constant dense<0.000000e+00> : vector<8x256xf32>
    %42 = tpu.matmul %41, %40, %cst_38 {dimension_numbers = #tpu.dot_dimension_numbers<[1], [0], [0], [1], [0, 0, 1, 1], [], []>} : vector<8x72xbf16>, vector<72x256xbf16>, vector<8x256xf32> -> vector<8x256xf32>
    %43 = vector.broadcast %4 : vector<8x1xf32> to vector<8x256xf32>
    %44 = arith.addf %42, %43 : vector<8x256xf32>
    %cst_39 = arith.constant 0.000000e+00 : f32
    %45 = vector.broadcast %cst_39 : f32 to vector<8x256xf32>
    %46 = arith.maximumf %44, %45 : vector<8x256xf32>
    %c0_40 = arith.constant 0 : index
    %c17_41 = arith.constant 17 : index
    %47 = vector.load %arg16[%c0_40, %c17_41] : memref<8x290xf32, #tpu.memory_space<vmem>>, vector<8x256xf32>
    tpu.vector_store %arg16[%c0_40, %c17_41], %46 {strides = array<i32>} : memref<8x290xf32, #tpu.memory_space<vmem>>, vector<8x256xf32>,
    %c0_42 = arith.constant 0 : index
    %c0_43 = arith.constant 0 : index
    %48 = vector.load %arg16[%c0_42, %c0_43] : memref<8x290xf32, #tpu.memory_space<vmem>>, vector<8x256xf32>
    %c0_44 = arith.constant 0 : index
    %c0_45 = arith.constant 0 : index
    %c0_46 = arith.constant 0 : index
    %49 = vector.load %arg3[%c0_44, %c0_45, %c0_46] : memref<2x1x256xf32, #tpu.memory_space<vmem>>, vector<1x1x256xf32>
    %50 = vector.shape_cast %49 : vector<1x1x256xf32> to vector<1x256xf32>
    %51 = vector.broadcast %50 : vector<1x256xf32> to vector<8x256xf32>
    %52 = arith.mulf %48, %51 : vector<8x256xf32>
    %c0_47 = arith.constant 0 : index
    %c1_48 = arith.constant 1 : index
    %53 = vector.load %arg16[%c0_47, %c1_48] : memref<8x290xf32, #tpu.memory_space<vmem>>, vector<8x256xf32>
    %c0_49 = arith.constant 0 : index
    %c2_50 = arith.constant 2 : index
    %54 = vector.load %arg16[%c0_49, %c2_50] : memref<8x290xf32, #tpu.memory_space<vmem>>, vector<8x256xf32>
    %c1_51 = arith.constant 1 : index
    %c0_52 = arith.constant 0 : index
    %c0_53 = arith.constant 0 : index
    %55 = vector.load %arg3[%c1_51, %c0_52, %c0_53] : memref<2x1x256xf32, #tpu.memory_space<vmem>>, vector<1x1x256xf32>
    %56 = vector.shape_cast %55 : vector<1x1x256xf32> to vector<1x256xf32>
    %57 = vector.broadcast %56 : vector<1x256xf32> to vector<8x256xf32>
    %58 = arith.mulf %54, %57 : vector<8x256xf32>
    %c0_54 = arith.constant 0 : index
    %c16_55 = arith.constant 16 : index
    %59 = vector.load %arg16[%c0_54, %c16_55] : memref<8x290xf32, #tpu.memory_space<vmem>>, vector<8x256xf32>
    %c0_56 = arith.constant 0 : index
    %c0_57 = arith.constant 0 : index
    %c0_58 = arith.constant 0 : index
    %60 = vector.load %arg3[%c0_56, %c0_57, %c0_58] : memref<2x1x256xf32, #tpu.memory_space<vmem>>, vector<1x1x256xf32>
    %61 = vector.shape_cast %60 : vector<1x1x256xf32> to vector<1x256xf32>
    %62 = vector.broadcast %61 : vector<1x256xf32> to vector<8x256xf32>
    %63 = arith.mulf %59, %62 : vector<8x256xf32>
    %c0_59 = arith.constant 0 : index
    %c17_60 = arith.constant 17 : index
    %64 = vector.load %arg16[%c0_59, %c17_60] : memref<8x290xf32, #tpu.memory_space<vmem>>, vector<8x256xf32>
    %c0_61 = arith.constant 0 : index
    %c18_62 = arith.constant 18 : index
    %65 = vector.load %arg16[%c0_61, %c18_62] : memref<8x290xf32, #tpu.memory_space<vmem>>, vector<8x256xf32>
    %c1_63 = arith.constant 1 : index
    %c0_64 = arith.constant 0 : index
    %c0_65 = arith.constant 0 : index
    %66 = vector.load %arg3[%c1_63, %c0_64, %c0_65] : memref<2x1x256xf32, #tpu.memory_space<vmem>>, vector<1x1x256xf32>
    %67 = vector.shape_cast %66 : vector<1x1x256xf32> to vector<1x256xf32>
    %68 = vector.broadcast %67 : vector<1x256xf32> to vector<8x256xf32>
    %69 = arith.mulf %65, %68 : vector<8x256xf32>
    %c0_66 = arith.constant 0 : index
    %c32_67 = arith.constant 32 : index
    %70 = vector.load %arg16[%c0_66, %c32_67] : memref<8x290xf32, #tpu.memory_space<vmem>>, vector<8x256xf32>
    %c0_68 = arith.constant 0 : index
    %c0_69 = arith.constant 0 : index
    %c0_70 = arith.constant 0 : index
    %71 = vector.load %arg3[%c0_68, %c0_69, %c0_70] : memref<2x1x256xf32, #tpu.memory_space<vmem>>, vector<1x1x256xf32>
    %72 = vector.shape_cast %71 : vector<1x1x256xf32> to vector<1x256xf32>
    %73 = vector.broadcast %72 : vector<1x256xf32> to vector<8x256xf32>
    %74 = arith.mulf %70, %73 : vector<8x256xf32>
    %c0_71 = arith.constant 0 : index
    %c33_72 = arith.constant 33 : index
    %75 = vector.load %arg16[%c0_71, %c33_72] : memref<8x290xf32, #tpu.memory_space<vmem>>, vector<8x256xf32>
    %c0_73 = arith.constant 0 : index
    %c34_74 = arith.constant 34 : index
    %76 = vector.load %arg16[%c0_73, %c34_74] : memref<8x290xf32, #tpu.memory_space<vmem>>, vector<8x256xf32>
    %c1_75 = arith.constant 1 : index
    %c0_76 = arith.constant 0 : index
    %c0_77 = arith.constant 0 : index
    %77 = vector.load %arg3[%c1_75, %c0_76, %c0_77] : memref<2x1x256xf32, #tpu.memory_space<vmem>>, vector<1x1x256xf32>
    %78 = vector.shape_cast %77 : vector<1x1x256xf32> to vector<1x256xf32>
    %79 = vector.broadcast %78 : vector<1x256xf32> to vector<8x256xf32>
    %80 = arith.mulf %76, %79 : vector<8x256xf32>
    %81 = tpu.concatenate %52, %53, %58, %63, %64, %69, %74, %75, %80 in 0 : vector<8x256xf32>, vector<8x256xf32>, vector<8x256xf32>, vector<8x256xf32>, vector<8x256xf32>, vector<8x256xf32>, vector<8x256xf32>, vector<8x256xf32>, vector<8x256xf32> -> vector<72x256xf32>
    %82 = arith.truncf %81 : vector<72x256xf32> to vector<72x256xbf16>
    %c0_78 = arith.constant 0 : index
    %c0_79 = arith.constant 0 : index
    %83 = vector.load %arg6[%c0_78, %c0_79] : memref<8x72xbf16, #tpu.memory_space<vmem>>, vector<8x72xbf16>
    %cst_80 = arith.constant dense<0.000000e+00> : vector<8x256xf32>
    %84 = tpu.matmul %83, %82, %cst_80 {dimension_numbers = #tpu.dot_dimension_numbers<[1], [0], [0], [1], [0, 0, 1, 1], [], []>} : vector<8x72xbf16>, vector<72x256xbf16>, vector<8x256xf32> -> vector<8x256xf32>
    %cst_81 = arith.constant 0.000000e+00 : f32
    %85 = vector.broadcast %cst_81 : f32 to vector<8x256xf32>
    %86 = arith.maximumf %84, %85 : vector<8x256xf32>
    %87 = vector.extract_strided_slice %86 {offsets = [0, 0], sizes = [8, 16], strides = [1, 1]} : vector<8x256xf32> to vector<8x16xf32>
    %c0_82 = arith.constant 0 : index
    %c0_83 = arith.constant 0 : index
    %88 = vector.load %arg17[%c0_82, %c0_83] : memref<128x16xf32, #tpu.memory_space<vmem>>, vector<8x16xf32>
    tpu.vector_store %arg17[%c0_82, %c0_83], %87 {strides = array<i32>} : memref<128x16xf32, #tpu.memory_space<vmem>>, vector<8x16xf32>,
    %89 = vector.extract_strided_slice %86 {offsets = [0, 16], sizes = [8, 16], strides = [1, 1]} : vector<8x256xf32> to vector<8x16xf32>
    %c8 = arith.constant 8 : index
    %c0_84 = arith.constant 0 : index
    %90 = vector.load %arg17[%c8, %c0_84] : memref<128x16xf32, #tpu.memory_space<vmem>>, vector<8x16xf32>
    tpu.vector_store %arg17[%c8, %c0_84], %89 {strides = array<i32>} : memref<128x16xf32, #tpu.memory_space<vmem>>, vector<8x16xf32>,
    %91 = vector.extract_strided_slice %86 {offsets = [0, 32], sizes = [8, 16], strides = [1, 1]} : vector<8x256xf32> to vector<8x16xf32>
    %c16_85 = arith.constant 16 : index
    %c0_86 = arith.constant 0 : index
    %92 = vector.load %arg17[%c16_85, %c0_86] : memref<128x16xf32, #tpu.memory_space<vmem>>, vector<8x16xf32>
    tpu.vector_store %arg17[%c16_85, %c0_86], %91 {strides = array<i32>} : memref<128x16xf32, #tpu.memory_space<vmem>>, vector<8x16xf32>,
    %93 = vector.extract_strided_slice %86 {offsets = [0, 48], sizes = [8, 16], strides = [1, 1]} : vector<8x256xf32> to vector<8x16xf32>
    %c24 = arith.constant 24 : index
    %c0_87 = arith.constant 0 : index
    %94 = vector.load %arg17[%c24, %c0_87] : memref<128x16xf32, #tpu.memory_space<vmem>>, vector<8x16xf32>
    tpu.vector_store %arg17[%c24, %c0_87], %93 {strides = array<i32>} : memref<128x16xf32, #tpu.memory_space<vmem>>, vector<8x16xf32>,
    %95 = vector.extract_strided_slice %86 {offsets = [0, 64], sizes = [8, 16], strides = [1, 1]} : vector<8x256xf32> to vector<8x16xf32>
    %c32_88 = arith.constant 32 : index
    %c0_89 = arith.constant 0 : index
    %96 = vector.load %arg17[%c32_88, %c0_89] : memref<128x16xf32, #tpu.memory_space<vmem>>, vector<8x16xf32>
    tpu.vector_store %arg17[%c32_88, %c0_89], %95 {strides = array<i32>} : memref<128x16xf32, #tpu.memory_space<vmem>>, vector<8x16xf32>,
    %97 = vector.extract_strided_slice %86 {offsets = [0, 80], sizes = [8, 16], strides = [1, 1]} : vector<8x256xf32> to vector<8x16xf32>
    %c40 = arith.constant 40 : index
    %c0_90 = arith.constant 0 : index
    %98 = vector.load %arg17[%c40, %c0_90] : memref<128x16xf32, #tpu.memory_space<vmem>>, vector<8x16xf32>
    tpu.vector_store %arg17[%c40, %c0_90], %97 {strides = array<i32>} : memref<128x16xf32, #tpu.memory_space<vmem>>, vector<8x16xf32>,
    %99 = vector.extract_strided_slice %86 {offsets = [0, 96], sizes = [8, 16], strides = [1, 1]} : vector<8x256xf32> to vector<8x16xf32>
    %c48 = arith.constant 48 : index
    %c0_91 = arith.constant 0 : index
    %100 = vector.load %arg17[%c48, %c0_91] : memref<128x16xf32, #tpu.memory_space<vmem>>, vector<8x16xf32>
    tpu.vector_store %arg17[%c48, %c0_91], %99 {strides = array<i32>} : memref<128x16xf32, #tpu.memory_space<vmem>>, vector<8x16xf32>,
    %101 = vector.extract_strided_slice %86 {offsets = [0, 112], sizes = [8, 16], strides = [1, 1]} : vector<8x256xf32> to vector<8x16xf32>
    %c56 = arith.constant 56 : index
    %c0_92 = arith.constant 0 : index
    %102 = vector.load %arg17[%c56, %c0_92] : memref<128x16xf32, #tpu.memory_space<vmem>>, vector<8x16xf32>
    tpu.vector_store %arg17[%c56, %c0_92], %101 {strides = array<i32>} : memref<128x16xf32, #tpu.memory_space<vmem>>, vector<8x16xf32>,
    %103 = vector.extract_strided_slice %86 {offsets = [0, 128], sizes = [8, 16], strides = [1, 1]} : vector<8x256xf32> to vector<8x16xf32>
    %c64 = arith.constant 64 : index
    %c0_93 = arith.constant 0 : index
    %104 = vector.load %arg17[%c64, %c0_93] : memref<128x16xf32, #tpu.memory_space<vmem>>, vector<8x16xf32>
    tpu.vector_store %arg17[%c64, %c0_93], %103 {strides = array<i32>} : memref<128x16xf32, #tpu.memory_space<vmem>>, vector<8x16xf32>,
    %105 = vector.extract_strided_slice %86 {offsets = [0, 144], sizes = [8, 16], strides = [1, 1]} : vector<8x256xf32> to vector<8x16xf32>
    %c72 = arith.constant 72 : index
    %c0_94 = arith.constant 0 : index
    %106 = vector.load %arg17[%c72, %c0_94] : memref<128x16xf32, #tpu.memory_space<vmem>>, vector<8x16xf32>
    tpu.vector_store %arg17[%c72, %c0_94], %105 {strides = array<i32>} : memref<128x16xf32, #tpu.memory_space<vmem>>, vector<8x16xf32>,
    %107 = vector.extract_strided_slice %86 {offsets = [0, 160], sizes = [8, 16], strides = [1, 1]} : vector<8x256xf32> to vector<8x16xf32>
    %c80 = arith.constant 80 : index
    %c0_95 = arith.constant 0 : index
    %108 = vector.load %arg17[%c80, %c0_95] : memref<128x16xf32, #tpu.memory_space<vmem>>, vector<8x16xf32>
    tpu.vector_store %arg17[%c80, %c0_95], %107 {strides = array<i32>} : memref<128x16xf32, #tpu.memory_space<vmem>>, vector<8x16xf32>,
    %109 = vector.extract_strided_slice %86 {offsets = [0, 176], sizes = [8, 16], strides = [1, 1]} : vector<8x256xf32> to vector<8x16xf32>
    %c88 = arith.constant 88 : index
    %c0_96 = arith.constant 0 : index
    %110 = vector.load %arg17[%c88, %c0_96] : memref<128x16xf32, #tpu.memory_space<vmem>>, vector<8x16xf32>
    tpu.vector_store %arg17[%c88, %c0_96], %109 {strides = array<i32>} : memref<128x16xf32, #tpu.memory_space<vmem>>, vector<8x16xf32>,
    %111 = vector.extract_strided_slice %86 {offsets = [0, 192], sizes = [8, 16], strides = [1, 1]} : vector<8x256xf32> to vector<8x16xf32>
    %c96 = arith.constant 96 : index
    %c0_97 = arith.constant 0 : index
    %112 = vector.load %arg17[%c96, %c0_97] : memref<128x16xf32, #tpu.memory_space<vmem>>, vector<8x16xf32>
    tpu.vector_store %arg17[%c96, %c0_97], %111 {strides = array<i32>} : memref<128x16xf32, #tpu.memory_space<vmem>>, vector<8x16xf32>,
    %113 = vector.extract_strided_slice %86 {offsets = [0, 208], sizes = [8, 16], strides = [1, 1]} : vector<8x256xf32> to vector<8x16xf32>
    %c104 = arith.constant 104 : index
    %c0_98 = arith.constant 0 : index
    %114 = vector.load %arg17[%c104, %c0_98] : memref<128x16xf32, #tpu.memory_space<vmem>>, vector<8x16xf32>
    tpu.vector_store %arg17[%c104, %c0_98], %113 {strides = array<i32>} : memref<128x16xf32, #tpu.memory_space<vmem>>, vector<8x16xf32>,
    %115 = vector.extract_strided_slice %86 {offsets = [0, 224], sizes = [8, 16], strides = [1, 1]} : vector<8x256xf32> to vector<8x16xf32>
    %c112 = arith.constant 112 : index
    %c0_99 = arith.constant 0 : index
    %116 = vector.load %arg17[%c112, %c0_99] : memref<128x16xf32, #tpu.memory_space<vmem>>, vector<8x16xf32>
    tpu.vector_store %arg17[%c112, %c0_99], %115 {strides = array<i32>} : memref<128x16xf32, #tpu.memory_space<vmem>>, vector<8x16xf32>,
    %117 = vector.extract_strided_slice %86 {offsets = [0, 240], sizes = [8, 16], strides = [1, 1]} : vector<8x256xf32> to vector<8x16xf32>
    %c120 = arith.constant 120 : index
    %c0_100 = arith.constant 0 : index
    %118 = vector.load %arg17[%c120, %c0_100] : memref<128x16xf32, #tpu.memory_space<vmem>>, vector<8x16xf32>
    tpu.vector_store %arg17[%c120, %c0_100], %117 {strides = array<i32>} : memref<128x16xf32, #tpu.memory_space<vmem>>, vector<8x16xf32>,
    %c0_101 = arith.constant 0 : index
    %c0_102 = arith.constant 0 : index
    %119 = vector.load %arg7[%c0_101, %c0_102] : memref<32x128xbf16, #tpu.memory_space<vmem>>, vector<32x128xbf16>
    %c0_103 = arith.constant 0 : index
    %c0_104 = arith.constant 0 : index
    %120 = vector.load %arg17[%c0_103, %c0_104] : memref<128x16xf32, #tpu.memory_space<vmem>>, vector<128x16xf32>
    %121 = arith.truncf %120 : vector<128x16xf32> to vector<128x16xbf16>
    %cst_105 = arith.constant dense<0.000000e+00> : vector<32x16xf32>
    %122 = tpu.matmul %119, %121, %cst_105 {dimension_numbers = #tpu.dot_dimension_numbers<[1], [0], [0], [1], [0, 0, 1, 1], [], []>} : vector<32x128xbf16>, vector<128x16xbf16>, vector<32x16xf32> -> vector<32x16xf32>
    %c0_106 = arith.constant 0 : index
    %c0_107 = arith.constant 0 : index
    %123 = vector.load %arg8[%c0_106, %c0_107] : memref<32x1xf32, #tpu.memory_space<vmem>>, vector<32x1xf32>
    %124 = vector.broadcast %123 : vector<32x1xf32> to vector<32x16xf32>
    %125 = arith.addf %122, %124 : vector<32x16xf32>
    %c0_108 = arith.constant 0 : index
    %c0_109 = arith.constant 0 : index
    %c0_110 = arith.constant 0 : index
    %126 = vector.load %arg15[%c0_108, %c0_109, %c0_110] : memref<1x32x16xf32, #tpu.memory_space<vmem>>, vector<1x32x16xf32>
    %127 = vector.shape_cast %126 : vector<1x32x16xf32> to vector<32x16xf32>
    %128 = vector.shape_cast %125 : vector<32x16xf32> to vector<1x32x16xf32>
    tpu.vector_store %arg15[%c0_108, %c0_109, %c0_110], %128 {strides = array<i32>} : memref<1x32x16xf32, #tpu.memory_space<vmem>>, vector<1x32x16xf32>,
    %129 = vector.extract_strided_slice %125 {offsets = [0, 0], sizes = [16, 16], strides = [1, 1]} : vector<32x16xf32> to vector<16x16xf32>
    %130 = vector.extract_strided_slice %125 {offsets = [16, 0], sizes = [16, 16], strides = [1, 1]} : vector<32x16xf32> to vector<16x16xf32>
    %131 = math.exp %130 : vector<16x16xf32>
    %c0_111 = arith.constant 0 : index
    %c0_112 = arith.constant 0 : index
    %c0_113 = arith.constant 0 : index
    %132 = vector.load %arg2[%c0_111, %c0_112, %c0_113] : memref<1x16x16xf32, #tpu.memory_space<vmem>>, vector<1x16x16xf32>
    %133 = vector.shape_cast %132 : vector<1x16x16xf32> to vector<16x16xf32>
    %134 = arith.mulf %131, %133 : vector<16x16xf32>
    %135 = arith.addf %129, %134 : vector<16x16xf32>
    %c0_114 = arith.constant 0 : index
    %c0_115 = arith.constant 0 : index
    %136 = vector.load %arg9[%c0_114, %c0_115] : memref<128x16xbf16, #tpu.memory_space<vmem>>, vector<128x16xbf16>
    %137 = arith.truncf %135 : vector<16x16xf32> to vector<16x16xbf16>
    %cst_116 = arith.constant dense<0.000000e+00> : vector<128x16xf32>
    %138 = tpu.matmul %136, %137, %cst_116 {dimension_numbers = #tpu.dot_dimension_numbers<[1], [0], [0], [1], [0, 0, 1, 1], [], []>} : vector<128x16xbf16>, vector<16x16xbf16>, vector<128x16xf32> -> vector<128x16xf32>
    %c0_117 = arith.constant 0 : index
    %c0_118 = arith.constant 0 : index
    %139 = vector.load %arg10[%c0_117, %c0_118] : memref<128x1xf32, #tpu.memory_space<vmem>>, vector<128x1xf32>
    %140 = vector.broadcast %139 : vector<128x1xf32> to vector<128x16xf32>
    %141 = arith.addf %138, %140 : vector<128x16xf32>
    %142 = vector.extract_strided_slice %141 {offsets = [0, 0], sizes = [8, 16], strides = [1, 1]} : vector<128x16xf32> to vector<8x16xf32>
    %c0_119 = arith.constant 0 : index
    %c0_120 = arith.constant 0 : index
    %143 = vector.load %arg18[%c0_119, %c0_120] : memref<8x256xf32, #tpu.memory_space<vmem>>, vector<8x16xf32>
    tpu.vector_store %arg18[%c0_119, %c0_120], %142 {strides = array<i32>} : memref<8x256xf32, #tpu.memory_space<vmem>>, vector<8x16xf32>,
    %144 = vector.extract_strided_slice %141 {offsets = [8, 0], sizes = [8, 16], strides = [1, 1]} : vector<128x16xf32> to vector<8x16xf32>
    %c0_121 = arith.constant 0 : index
    %c16_122 = arith.constant 16 : index
    %145 = vector.load %arg18[%c0_121, %c16_122] : memref<8x256xf32, #tpu.memory_space<vmem>>, vector<8x16xf32>
    tpu.vector_store %arg18[%c0_121, %c16_122], %144 {strides = array<i32>} : memref<8x256xf32, #tpu.memory_space<vmem>>, vector<8x16xf32>,
    %146 = vector.extract_strided_slice %141 {offsets = [16, 0], sizes = [8, 16], strides = [1, 1]} : vector<128x16xf32> to vector<8x16xf32>
    %c0_123 = arith.constant 0 : index
    %c32_124 = arith.constant 32 : index
    %147 = vector.load %arg18[%c0_123, %c32_124] : memref<8x256xf32, #tpu.memory_space<vmem>>, vector<8x16xf32>
    tpu.vector_store %arg18[%c0_123, %c32_124], %146 {strides = array<i32>} : memref<8x256xf32, #tpu.memory_space<vmem>>, vector<8x16xf32>,
    %148 = vector.extract_strided_slice %141 {offsets = [24, 0], sizes = [8, 16], strides = [1, 1]} : vector<128x16xf32> to vector<8x16xf32>
    %c0_125 = arith.constant 0 : index
    %c48_126 = arith.constant 48 : index
    %149 = vector.load %arg18[%c0_125, %c48_126] : memref<8x256xf32, #tpu.memory_space<vmem>>, vector<8x16xf32>
    tpu.vector_store %arg18[%c0_125, %c48_126], %148 {strides = array<i32>} : memref<8x256xf32, #tpu.memory_space<vmem>>, vector<8x16xf32>,
    %150 = vector.extract_strided_slice %141 {offsets = [32, 0], sizes = [8, 16], strides = [1, 1]} : vector<128x16xf32> to vector<8x16xf32>
    %c0_127 = arith.constant 0 : index
    %c64_128 = arith.constant 64 : index
    %151 = vector.load %arg18[%c0_127, %c64_128] : memref<8x256xf32, #tpu.memory_space<vmem>>, vector<8x16xf32>
    tpu.vector_store %arg18[%c0_127, %c64_128], %150 {strides = array<i32>} : memref<8x256xf32, #tpu.memory_space<vmem>>, vector<8x16xf32>,
    %152 = vector.extract_strided_slice %141 {offsets = [40, 0], sizes = [8, 16], strides = [1, 1]} : vector<128x16xf32> to vector<8x16xf32>
    %c0_129 = arith.constant 0 : index
    %c80_130 = arith.constant 80 : index
    %153 = vector.load %arg18[%c0_129, %c80_130] : memref<8x256xf32, #tpu.memory_space<vmem>>, vector<8x16xf32>
    tpu.vector_store %arg18[%c0_129, %c80_130], %152 {strides = array<i32>} : memref<8x256xf32, #tpu.memory_space<vmem>>, vector<8x16xf32>,
    %154 = vector.extract_strided_slice %141 {offsets = [48, 0], sizes = [8, 16], strides = [1, 1]} : vector<128x16xf32> to vector<8x16xf32>
    %c0_131 = arith.constant 0 : index
    %c96_132 = arith.constant 96 : index
    %155 = vector.load %arg18[%c0_131, %c96_132] : memref<8x256xf32, #tpu.memory_space<vmem>>, vector<8x16xf32>
    tpu.vector_store %arg18[%c0_131, %c96_132], %154 {strides = array<i32>} : memref<8x256xf32, #tpu.memory_space<vmem>>, vector<8x16xf32>,
    %156 = vector.extract_strided_slice %141 {offsets = [56, 0], sizes = [8, 16], strides = [1, 1]} : vector<128x16xf32> to vector<8x16xf32>
    %c0_133 = arith.constant 0 : index
    %c112_134 = arith.constant 112 : index
    %157 = vector.load %arg18[%c0_133, %c112_134] : memref<8x256xf32, #tpu.memory_space<vmem>>, vector<8x16xf32>
    tpu.vector_store %arg18[%c0_133, %c112_134], %156 {strides = array<i32>} : memref<8x256xf32, #tpu.memory_space<vmem>>, vector<8x16xf32>,
    %158 = vector.extract_strided_slice %141 {offsets = [64, 0], sizes = [8, 16], strides = [1, 1]} : vector<128x16xf32> to vector<8x16xf32>
    %c0_135 = arith.constant 0 : index
    %c128 = arith.constant 128 : index
    %159 = vector.load %arg18[%c0_135, %c128] : memref<8x256xf32, #tpu.memory_space<vmem>>, vector<8x16xf32>
    tpu.vector_store %arg18[%c0_135, %c128], %158 {strides = array<i32>} : memref<8x256xf32, #tpu.memory_space<vmem>>, vector<8x16xf32>,
    %160 = vector.extract_strided_slice %141 {offsets = [72, 0], sizes = [8, 16], strides = [1, 1]} : vector<128x16xf32> to vector<8x16xf32>
    %c0_136 = arith.constant 0 : index
    %c144 = arith.constant 144 : index
    %161 = vector.load %arg18[%c0_136, %c144] : memref<8x256xf32, #tpu.memory_space<vmem>>, vector<8x16xf32>
    tpu.vector_store %arg18[%c0_136, %c144], %160 {strides = array<i32>} : memref<8x256xf32, #tpu.memory_space<vmem>>, vector<8x16xf32>,
    %162 = vector.extract_strided_slice %141 {offsets = [80, 0], sizes = [8, 16], strides = [1, 1]} : vector<128x16xf32> to vector<8x16xf32>
    %c0_137 = arith.constant 0 : index
    %c160 = arith.constant 160 : index
    %163 = vector.load %arg18[%c0_137, %c160] : memref<8x256xf32, #tpu.memory_space<vmem>>, vector<8x16xf32>
    tpu.vector_store %arg18[%c0_137, %c160], %162 {strides = array<i32>} : memref<8x256xf32, #tpu.memory_space<vmem>>, vector<8x16xf32>,
    %164 = vector.extract_strided_slice %141 {offsets = [88, 0], sizes = [8, 16], strides = [1, 1]} : vector<128x16xf32> to vector<8x16xf32>
    %c0_138 = arith.constant 0 : index
    %c176 = arith.constant 176 : index
    %165 = vector.load %arg18[%c0_138, %c176] : memref<8x256xf32, #tpu.memory_space<vmem>>, vector<8x16xf32>
    tpu.vector_store %arg18[%c0_138, %c176], %164 {strides = array<i32>} : memref<8x256xf32, #tpu.memory_space<vmem>>, vector<8x16xf32>,
    %166 = vector.extract_strided_slice %141 {offsets = [96, 0], sizes = [8, 16], strides = [1, 1]} : vector<128x16xf32> to vector<8x16xf32>
    %c0_139 = arith.constant 0 : index
    %c192 = arith.constant 192 : index
    %167 = vector.load %arg18[%c0_139, %c192] : memref<8x256xf32, #tpu.memory_space<vmem>>, vector<8x16xf32>
    tpu.vector_store %arg18[%c0_139, %c192], %166 {strides = array<i32>} : memref<8x256xf32, #tpu.memory_space<vmem>>, vector<8x16xf32>,
    %168 = vector.extract_strided_slice %141 {offsets = [104, 0], sizes = [8, 16], strides = [1, 1]} : vector<128x16xf32> to vector<8x16xf32>
    %c0_140 = arith.constant 0 : index
    %c208 = arith.constant 208 : index
    %169 = vector.load %arg18[%c0_140, %c208] : memref<8x256xf32, #tpu.memory_space<vmem>>, vector<8x16xf32>
    tpu.vector_store %arg18[%c0_140, %c208], %168 {strides = array<i32>} : memref<8x256xf32, #tpu.memory_space<vmem>>, vector<8x16xf32>,
    %170 = vector.extract_strided_slice %141 {offsets = [112, 0], sizes = [8, 16], strides = [1, 1]} : vector<128x16xf32> to vector<8x16xf32>
    %c0_141 = arith.constant 0 : index
    %c224 = arith.constant 224 : index
    %171 = vector.load %arg18[%c0_141, %c224] : memref<8x256xf32, #tpu.memory_space<vmem>>, vector<8x16xf32>
    tpu.vector_store %arg18[%c0_141, %c224], %170 {strides = array<i32>} : memref<8x256xf32, #tpu.memory_space<vmem>>, vector<8x16xf32>,
    %172 = vector.extract_strided_slice %141 {offsets = [120, 0], sizes = [8, 16], strides = [1, 1]} : vector<128x16xf32> to vector<8x16xf32>
    %c0_142 = arith.constant 0 : index
    %c240 = arith.constant 240 : index
    %173 = vector.load %arg18[%c0_142, %c240] : memref<8x256xf32, #tpu.memory_space<vmem>>, vector<8x16xf32>
    tpu.vector_store %arg18[%c0_142, %c240], %172 {strides = array<i32>} : memref<8x256xf32, #tpu.memory_space<vmem>>, vector<8x16xf32>,
    %c0_143 = arith.constant 0 : index
    %c0_144 = arith.constant 0 : index
    %174 = vector.load %arg18[%c0_143, %c0_144] : memref<8x256xf32, #tpu.memory_space<vmem>>, vector<8x256xf32>
    %c0_145 = arith.constant 0 : index
    %c17_146 = arith.constant 17 : index
    %175 = vector.load %arg16[%c0_145, %c17_146] : memref<8x290xf32, #tpu.memory_space<vmem>>, vector<8x256xf32>
    tpu.vector_store %arg16[%c0_145, %c17_146], %174 {strides = array<i32>} : memref<8x290xf32, #tpu.memory_space<vmem>>, vector<8x256xf32>,
    %c0_147 = arith.constant 0 : index
    %c0_148 = arith.constant 0 : index
    %176 = vector.load %arg16[%c0_147, %c0_148] : memref<8x290xf32, #tpu.memory_space<vmem>>, vector<8x256xf32>
    %c0_149 = arith.constant 0 : index
    %c0_150 = arith.constant 0 : index
    %c0_151 = arith.constant 0 : index
    %177 = vector.load %arg3[%c0_149, %c0_150, %c0_151] : memref<2x1x256xf32, #tpu.memory_space<vmem>>, vector<1x1x256xf32>
    %178 = vector.shape_cast %177 : vector<1x1x256xf32> to vector<1x256xf32>
    %179 = vector.broadcast %178 : vector<1x256xf32> to vector<8x256xf32>
    %180 = arith.mulf %176, %179 : vector<8x256xf32>
    %c0_152 = arith.constant 0 : index
    %c1_153 = arith.constant 1 : index
    %181 = vector.load %arg16[%c0_152, %c1_153] : memref<8x290xf32, #tpu.memory_space<vmem>>, vector<8x256xf32>
    %c0_154 = arith.constant 0 : index
    %c2_155 = arith.constant 2 : index
    %182 = vector.load %arg16[%c0_154, %c2_155] : memref<8x290xf32, #tpu.memory_space<vmem>>, vector<8x256xf32>
    %c1_156 = arith.constant 1 : index
    %c0_157 = arith.constant 0 : index
    %c0_158 = arith.constant 0 : index
    %183 = vector.load %arg3[%c1_156, %c0_157, %c0_158] : memref<2x1x256xf32, #tpu.memory_space<vmem>>, vector<1x1x256xf32>
    %184 = vector.shape_cast %183 : vector<1x1x256xf32> to vector<1x256xf32>
    %185 = vector.broadcast %184 : vector<1x256xf32> to vector<8x256xf32>
    %186 = arith.mulf %182, %185 : vector<8x256xf32>
    %c0_159 = arith.constant 0 : index
    %c16_160 = arith.constant 16 : index
    %187 = vector.load %arg16[%c0_159, %c16_160] : memref<8x290xf32, #tpu.memory_space<vmem>>, vector<8x256xf32>
    %c0_161 = arith.constant 0 : index
    %c0_162 = arith.constant 0 : index
    %c0_163 = arith.constant 0 : index
    %188 = vector.load %arg3[%c0_161, %c0_162, %c0_163] : memref<2x1x256xf32, #tpu.memory_space<vmem>>, vector<1x1x256xf32>
    %189 = vector.shape_cast %188 : vector<1x1x256xf32> to vector<1x256xf32>
    %190 = vector.broadcast %189 : vector<1x256xf32> to vector<8x256xf32>
    %191 = arith.mulf %187, %190 : vector<8x256xf32>
    %c0_164 = arith.constant 0 : index
    %c17_165 = arith.constant 17 : index
    %192 = vector.load %arg16[%c0_164, %c17_165] : memref<8x290xf32, #tpu.memory_space<vmem>>, vector<8x256xf32>
    %c0_166 = arith.constant 0 : index
    %c18_167 = arith.constant 18 : index
    %193 = vector.load %arg16[%c0_166, %c18_167] : memref<8x290xf32, #tpu.memory_space<vmem>>, vector<8x256xf32>
    %c1_168 = arith.constant 1 : index
    %c0_169 = arith.constant 0 : index
    %c0_170 = arith.constant 0 : index
    %194 = vector.load %arg3[%c1_168, %c0_169, %c0_170] : memref<2x1x256xf32, #tpu.memory_space<vmem>>, vector<1x1x256xf32>
    %195 = vector.shape_cast %194 : vector<1x1x256xf32> to vector<1x256xf32>
    %196 = vector.broadcast %195 : vector<1x256xf32> to vector<8x256xf32>
    %197 = arith.mulf %193, %196 : vector<8x256xf32>
    %c0_171 = arith.constant 0 : index
    %c32_172 = arith.constant 32 : index
    %198 = vector.load %arg16[%c0_171, %c32_172] : memref<8x290xf32, #tpu.memory_space<vmem>>, vector<8x256xf32>
    %c0_173 = arith.constant 0 : index
    %c0_174 = arith.constant 0 : index
    %c0_175 = arith.constant 0 : index
    %199 = vector.load %arg3[%c0_173, %c0_174, %c0_175] : memref<2x1x256xf32, #tpu.memory_space<vmem>>, vector<1x1x256xf32>
    %200 = vector.shape_cast %199 : vector<1x1x256xf32> to vector<1x256xf32>
    %201 = vector.broadcast %200 : vector<1x256xf32> to vector<8x256xf32>
    %202 = arith.mulf %198, %201 : vector<8x256xf32>
    %c0_176 = arith.constant 0 : index
    %c33_177 = arith.constant 33 : index
    %203 = vector.load %arg16[%c0_176, %c33_177] : memref<8x290xf32, #tpu.memory_space<vmem>>, vector<8x256xf32>
    %c0_178 = arith.constant 0 : index
    %c34_179 = arith.constant 34 : index
    %204 = vector.load %arg16[%c0_178, %c34_179] : memref<8x290xf32, #tpu.memory_space<vmem>>, vector<8x256xf32>
    %c1_180 = arith.constant 1 : index
    %c0_181 = arith.constant 0 : index
    %c0_182 = arith.constant 0 : index
    %205 = vector.load %arg3[%c1_180, %c0_181, %c0_182] : memref<2x1x256xf32, #tpu.memory_space<vmem>>, vector<1x1x256xf32>
    %206 = vector.shape_cast %205 : vector<1x1x256xf32> to vector<1x256xf32>
    %207 = vector.broadcast %206 : vector<1x256xf32> to vector<8x256xf32>
    %208 = arith.mulf %204, %207 : vector<8x256xf32>
    %209 = tpu.concatenate %180, %181, %186, %191, %192, %197, %202, %203, %208 in 0 : vector<8x256xf32>, vector<8x256xf32>, vector<8x256xf32>, vector<8x256xf32>, vector<8x256xf32>, vector<8x256xf32>, vector<8x256xf32>, vector<8x256xf32>, vector<8x256xf32> -> vector<72x256xf32>
    %210 = arith.truncf %209 : vector<72x256xf32> to vector<72x256xbf16>
    %c0_183 = arith.constant 0 : index
    %c0_184 = arith.constant 0 : index
    %211 = vector.load %arg11[%c0_183, %c0_184] : memref<8x72xbf16, #tpu.memory_space<vmem>>, vector<8x72xbf16>
    %cst_185 = arith.constant dense<0.000000e+00> : vector<8x256xf32>
    %212 = tpu.matmul %211, %210, %cst_185 {dimension_numbers = #tpu.dot_dimension_numbers<[1], [0], [0], [1], [0, 0, 1, 1], [], []>} : vector<8x72xbf16>, vector<72x256xbf16>, vector<8x256xf32> -> vector<8x256xf32>
    %cst_186 = arith.constant 0.000000e+00 : f32
    %213 = vector.broadcast %cst_186 : f32 to vector<8x256xf32>
    %214 = arith.maximumf %212, %213 : vector<8x256xf32>
    %c0_187 = arith.constant 0 : index
    %c0_188 = arith.constant 0 : index
    %215 = vector.load %arg13[%c0_187, %c0_188] : memref<8x1xf32, #tpu.memory_space<vmem>>, vector<8x1xf32>
    %c0_189 = arith.constant 0 : index
    %c17_190 = arith.constant 17 : index
    %216 = vector.load %arg16[%c0_189, %c17_190] : memref<8x290xf32, #tpu.memory_space<vmem>>, vector<8x256xf32>
    tpu.vector_store %arg16[%c0_189, %c17_190], %214 {strides = array<i32>} : memref<8x290xf32, #tpu.memory_space<vmem>>, vector<8x256xf32>,
    %c0_191 = arith.constant 0 : index
    %c0_192 = arith.constant 0 : index
    %217 = vector.load %arg16[%c0_191, %c0_192] : memref<8x290xf32, #tpu.memory_space<vmem>>, vector<8x256xf32>
    %c0_193 = arith.constant 0 : index
    %c0_194 = arith.constant 0 : index
    %c0_195 = arith.constant 0 : index
    %218 = vector.load %arg3[%c0_193, %c0_194, %c0_195] : memref<2x1x256xf32, #tpu.memory_space<vmem>>, vector<1x1x256xf32>
    %219 = vector.shape_cast %218 : vector<1x1x256xf32> to vector<1x256xf32>
    %220 = vector.broadcast %219 : vector<1x256xf32> to vector<8x256xf32>
    %221 = arith.mulf %217, %220 : vector<8x256xf32>
    %c0_196 = arith.constant 0 : index
    %c1_197 = arith.constant 1 : index
    %222 = vector.load %arg16[%c0_196, %c1_197] : memref<8x290xf32, #tpu.memory_space<vmem>>, vector<8x256xf32>
    %c0_198 = arith.constant 0 : index
    %c2_199 = arith.constant 2 : index
    %223 = vector.load %arg16[%c0_198, %c2_199] : memref<8x290xf32, #tpu.memory_space<vmem>>, vector<8x256xf32>
    %c1_200 = arith.constant 1 : index
    %c0_201 = arith.constant 0 : index
    %c0_202 = arith.constant 0 : index
    %224 = vector.load %arg3[%c1_200, %c0_201, %c0_202] : memref<2x1x256xf32, #tpu.memory_space<vmem>>, vector<1x1x256xf32>
    %225 = vector.shape_cast %224 : vector<1x1x256xf32> to vector<1x256xf32>
    %226 = vector.broadcast %225 : vector<1x256xf32> to vector<8x256xf32>
    %227 = arith.mulf %223, %226 : vector<8x256xf32>
    %c0_203 = arith.constant 0 : index
    %c16_204 = arith.constant 16 : index
    %228 = vector.load %arg16[%c0_203, %c16_204] : memref<8x290xf32, #tpu.memory_space<vmem>>, vector<8x256xf32>
    %c0_205 = arith.constant 0 : index
    %c0_206 = arith.constant 0 : index
    %c0_207 = arith.constant 0 : index
    %229 = vector.load %arg3[%c0_205, %c0_206, %c0_207] : memref<2x1x256xf32, #tpu.memory_space<vmem>>, vector<1x1x256xf32>
    %230 = vector.shape_cast %229 : vector<1x1x256xf32> to vector<1x256xf32>
    %231 = vector.broadcast %230 : vector<1x256xf32> to vector<8x256xf32>
    %232 = arith.mulf %228, %231 : vector<8x256xf32>
    %c0_208 = arith.constant 0 : index
    %c17_209 = arith.constant 17 : index
    %233 = vector.load %arg16[%c0_208, %c17_209] : memref<8x290xf32, #tpu.memory_space<vmem>>, vector<8x256xf32>
    %c0_210 = arith.constant 0 : index
    %c18_211 = arith.constant 18 : index
    %234 = vector.load %arg16[%c0_210, %c18_211] : memref<8x290xf32, #tpu.memory_space<vmem>>, vector<8x256xf32>
    %c1_212 = arith.constant 1 : index
    %c0_213 = arith.constant 0 : index
    %c0_214 = arith.constant 0 : index
    %235 = vector.load %arg3[%c1_212, %c0_213, %c0_214] : memref<2x1x256xf32, #tpu.memory_space<vmem>>, vector<1x1x256xf32>
    %236 = vector.shape_cast %235 : vector<1x1x256xf32> to vector<1x256xf32>
    %237 = vector.broadcast %236 : vector<1x256xf32> to vector<8x256xf32>
    %238 = arith.mulf %234, %237 : vector<8x256xf32>
    %c0_215 = arith.constant 0 : index
    %c32_216 = arith.constant 32 : index
    %239 = vector.load %arg16[%c0_215, %c32_216] : memref<8x290xf32, #tpu.memory_space<vmem>>, vector<8x256xf32>
    %c0_217 = arith.constant 0 : index
    %c0_218 = arith.constant 0 : index
    %c0_219 = arith.constant 0 : index
    %240 = vector.load %arg3[%c0_217, %c0_218, %c0_219] : memref<2x1x256xf32, #tpu.memory_space<vmem>>, vector<1x1x256xf32>
    %241 = vector.shape_cast %240 : vector<1x1x256xf32> to vector<1x256xf32>
    %242 = vector.broadcast %241 : vector<1x256xf32> to vector<8x256xf32>
    %243 = arith.mulf %239, %242 : vector<8x256xf32>
    %c0_220 = arith.constant 0 : index
    %c33_221 = arith.constant 33 : index
    %244 = vector.load %arg16[%c0_220, %c33_221] : memref<8x290xf32, #tpu.memory_space<vmem>>, vector<8x256xf32>
    %c0_222 = arith.constant 0 : index
    %c34_223 = arith.constant 34 : index
    %245 = vector.load %arg16[%c0_222, %c34_223] : memref<8x290xf32, #tpu.memory_space<vmem>>, vector<8x256xf32>
    %c1_224 = arith.constant 1 : index
    %c0_225 = arith.constant 0 : index
    %c0_226 = arith.constant 0 : index
    %246 = vector.load %arg3[%c1_224, %c0_225, %c0_226] : memref<2x1x256xf32, #tpu.memory_space<vmem>>, vector<1x1x256xf32>
    %247 = vector.shape_cast %246 : vector<1x1x256xf32> to vector<1x256xf32>
    %248 = vector.broadcast %247 : vector<1x256xf32> to vector<8x256xf32>
    %249 = arith.mulf %245, %248 : vector<8x256xf32>
    %250 = tpu.concatenate %221, %222, %227, %232, %233, %238, %243, %244, %249 in 0 : vector<8x256xf32>, vector<8x256xf32>, vector<8x256xf32>, vector<8x256xf32>, vector<8x256xf32>, vector<8x256xf32>, vector<8x256xf32>, vector<8x256xf32>, vector<8x256xf32> -> vector<72x256xf32>
    %251 = arith.truncf %250 : vector<72x256xf32> to vector<72x256xbf16>
    %c0_227 = arith.constant 0 : index
    %c0_228 = arith.constant 0 : index
    %252 = vector.load %arg12[%c0_227, %c0_228] : memref<8x72xbf16, #tpu.memory_space<vmem>>, vector<8x72xbf16>
    %cst_229 = arith.constant dense<0.000000e+00> : vector<8x256xf32>
    %253 = tpu.matmul %252, %251, %cst_229 {dimension_numbers = #tpu.dot_dimension_numbers<[1], [0], [0], [1], [0, 0, 1, 1], [], []>} : vector<8x72xbf16>, vector<72x256xbf16>, vector<8x256xf32> -> vector<8x256xf32>
    %254 = vector.broadcast %215 : vector<8x1xf32> to vector<8x256xf32>
    %255 = arith.addf %253, %254 : vector<8x256xf32>
    %c0_230 = arith.constant 0 : index
    %c0_231 = arith.constant 0 : index
    %c0_232 = arith.constant 0 : index
    %256 = vector.load %arg14[%c0_230, %c0_231, %c0_232] : memref<1x8x256xf32, #tpu.memory_space<vmem>>, vector<1x8x256xf32>
    %257 = vector.shape_cast %256 : vector<1x8x256xf32> to vector<8x256xf32>
    %258 = vector.shape_cast %255 : vector<8x256xf32> to vector<1x8x256xf32>
    tpu.vector_store %arg14[%c0_230, %c0_231, %c0_232], %258 {strides = array<i32>} : memref<1x8x256xf32, #tpu.memory_space<vmem>>, vector<1x8x256xf32>,
    return
  }
  func.func @transform_0(%arg0: i32) -> (i32, i32, i32) {
    %c0_i32 = arith.constant 0 : i32
    %c0_i32_0 = arith.constant 0 : i32
    %c0_i32_1 = arith.constant 0 : i32
    return %arg0, %c0_i32, %c0_i32_0 : i32, i32, i32
  }
  func.func @transform_1(%arg0: i32) -> (i32, i32, i32) {
    %c0_i32 = arith.constant 0 : i32
    %c0_i32_0 = arith.constant 0 : i32
    %c0_i32_1 = arith.constant 0 : i32
    return %arg0, %c0_i32, %c0_i32_0 : i32, i32, i32
  }
  func.func @transform_2(%arg0: i32) -> (i32, i32, i32) {
    %c0_i32 = arith.constant 0 : i32
    %c0_i32_0 = arith.constant 0 : i32
    %c0_i32_1 = arith.constant 0 : i32
    %c0_i32_2 = arith.constant 0 : i32
    return %c0_i32, %c0_i32_0, %c0_i32_1 : i32, i32, i32
  }
  func.func @transform_3(%arg0: i32) -> (i32, i32) {
    %c0_i32 = arith.constant 0 : i32
    %c0_i32_0 = arith.constant 0 : i32
    %c0_i32_1 = arith.constant 0 : i32
    return %c0_i32, %c0_i32_0 : i32, i32
  }
  func.func @transform_4(%arg0: i32) -> (i32, i32) {
    %c0_i32 = arith.constant 0 : i32
    %c0_i32_0 = arith.constant 0 : i32
    %c0_i32_1 = arith.constant 0 : i32
    return %c0_i32, %c0_i32_0 : i32, i32
  }
  func.func @transform_5(%arg0: i32) -> (i32, i32) {
    %c0_i32 = arith.constant 0 : i32
    %c0_i32_0 = arith.constant 0 : i32
    %c0_i32_1 = arith.constant 0 : i32
    return %c0_i32, %c0_i32_0 : i32, i32
  }
  func.func @transform_6(%arg0: i32) -> (i32, i32) {
    %c0_i32 = arith.constant 0 : i32
    %c0_i32_0 = arith.constant 0 : i32
    %c0_i32_1 = arith.constant 0 : i32
    return %c0_i32, %c0_i32_0 : i32, i32
  }
  func.func @transform_7(%arg0: i32) -> (i32, i32) {
    %c0_i32 = arith.constant 0 : i32
    %c0_i32_0 = arith.constant 0 : i32
    %c0_i32_1 = arith.constant 0 : i32
    return %c0_i32, %c0_i32_0 : i32, i32
  }
  func.func @transform_8(%arg0: i32) -> (i32, i32) {
    %c0_i32 = arith.constant 0 : i32
    %c0_i32_0 = arith.constant 0 : i32
    %c0_i32_1 = arith.constant 0 : i32
    return %c0_i32, %c0_i32_0 : i32, i32
  }
  func.func @transform_9(%arg0: i32) -> (i32, i32) {
    %c0_i32 = arith.constant 0 : i32
    %c0_i32_0 = arith.constant 0 : i32
    %c0_i32_1 = arith.constant 0 : i32
    return %c0_i32, %c0_i32_0 : i32, i32
  }
  func.func @transform_10(%arg0: i32) -> (i32, i32) {
    %c0_i32 = arith.constant 0 : i32
    %c0_i32_0 = arith.constant 0 : i32
    %c0_i32_1 = arith.constant 0 : i32
    return %c0_i32, %c0_i32_0 : i32, i32
  }
  func.func @transform_11(%arg0: i32) -> (i32, i32) {
    %c0_i32 = arith.constant 0 : i32
    %c0_i32_0 = arith.constant 0 : i32
    %c0_i32_1 = arith.constant 0 : i32
    return %c0_i32, %c0_i32_0 : i32, i32
  }
  func.func @transform_12(%arg0: i32) -> (i32, i32) {
    %c0_i32 = arith.constant 0 : i32
    %c0_i32_0 = arith.constant 0 : i32
    %c0_i32_1 = arith.constant 0 : i32
    return %c0_i32, %c0_i32_0 : i32, i32
  }
  func.func @transform_13(%arg0: i32) -> (i32, i32, i32) {
    %c0_i32 = arith.constant 0 : i32
    %c0_i32_0 = arith.constant 0 : i32
    %c0_i32_1 = arith.constant 0 : i32
    return %arg0, %c0_i32, %c0_i32_0 : i32, i32, i32
  }
  func.func @transform_14(%arg0: i32) -> (i32, i32, i32) {
    %c0_i32 = arith.constant 0 : i32
    %c0_i32_0 = arith.constant 0 : i32
    %c0_i32_1 = arith.constant 0 : i32
    return %arg0, %c0_i32, %c0_i32_0 : i32, i32, i32
  }
}

</mosaic_0001>

<llo_original>
// kernel: forward_impl.1
$region0: #{forward_impl.1}
  #allocation0 [shape = 'u32[]', space=smem, size = 0x4, offset = 0x4, fixed_abs, tag = 'smem constant byte address 0x4 - core index']
  #allocation1 [shape = 'u32[72,128]{1,0:T(1,128)}', space=vmem, size = 0x9000, scoped, tag = 'internal scratch']
  #allocation2 [shape = 'f32[8,290]{1,0:T(8,128)}', space=vmem, size = 0x3000, scoped, tag = 'scratch operand']
  #allocation3 [shape = 'f32[128,16]{1,0:T(8,128)}', space=vmem, size = 0x10000, scoped, tag = 'scratch operand']
  #allocation4 [shape = 'f32[8,256]{1,0:T(8,128)}', space=vmem, size = 0x2000, scoped, tag = 'scratch operand']
  %s0 = inlined_call_operand.vmem [shape: f32[2,8,256], index: 0, kind: input, shape index: {}]
  %s1 = inlined_call_operand.vmem [shape: f32[2,16,16], index: 1, kind: input, shape index: {}]
  %s2 = inlined_call_operand.vmem [shape: f32[2,1,256], index: 2, kind: input, shape index: {}]
  %s3 = inlined_call_operand.vmem [shape: bf16[8,72], index: 3, kind: input, shape index: {}]
  %s4 = inlined_call_operand.vmem [shape: f32[8,1], index: 4, kind: input, shape index: {}]
  %s5 = inlined_call_operand.vmem [shape: bf16[8,72], index: 5, kind: input, shape index: {}]
  %s6 = inlined_call_operand.vmem [shape: bf16[32,128], index: 6, kind: input, shape index: {}]
  %s7 = inlined_call_operand.vmem [shape: f32[32,1], index: 7, kind: input, shape index: {}]
  %s8 = inlined_call_operand.vmem [shape: bf16[128,16], index: 8, kind: input, shape index: {}]
  %s9 = inlined_call_operand.vmem [shape: f32[128,1], index: 9, kind: input, shape index: {}]
  %s10 = inlined_call_operand.vmem [shape: bf16[8,72], index: 10, kind: input, shape index: {}]
  %s11 = inlined_call_operand.vmem [shape: bf16[8,72], index: 11, kind: input, shape index: {}]
  %s12 = inlined_call_operand.vmem [shape: f32[8,1], index: 12, kind: input, shape index: {}]
  %s13 = inlined_call_operand.vmem [shape: f32[2,8,256], index: 13, kind: output, shape index: {0}]
  %s14 = inlined_call_operand.vmem [shape: f32[2,32,16], index: 14, kind: output, shape index: {1}]
  %15 = xla_tuple %s13, %s14
  %s16 = sld [smem:[#allocation0]]
  $region93: #{forward_impl.1} parent=0
    _
  %s18 = ssub.s32 1, %s16
  %s19 = scalar_select 0, %s18, %s16
  loop: start=0, step=1, limit=4
  $region2: #{forward_impl.1} parent=0 // loop_pre_header
    _
  $region3: #{forward_impl.1} parent=0 // loop_header
    %s21 = sphi 0, %s25
    %p22 = scmp.ge.s32.totalorder %s21, 4
    %s31 = sphi 0, %s33
    %s34 = sphi 0, %s31
    %s35 = sphi 0, %s34
    %s51 = sphi 0, %s35
    %s57 = sphi 0, %s59
    %s60 = sphi 0, %s57
    %s61 = sphi 0, %s60
    %s77 = sphi 0, %s61
    %s81 = sphi 0, %s81
    %s83 = sphi 0, %s81
    %s84 = sphi 0, %s83
    %s98 = sphi 0, %s84
    %s102 = sphi 0, %s102
    %s104 = sphi 0, %s102
    %s105 = sphi 0, %s104
    %s119 = sphi 0, %s105
    %s123 = sphi 0, %s123
    %s125 = sphi 0, %s123
    %s126 = sphi 0, %s125
    %s140 = sphi 0, %s126
    %s144 = sphi 0, %s144
    %s146 = sphi 0, %s144
    %s147 = sphi 0, %s146
    %s161 = sphi 0, %s147
    %s165 = sphi 0, %s165
    %s167 = sphi 0, %s165
    %s168 = sphi 0, %s167
    %s182 = sphi 0, %s168
    %s186 = sphi 0, %s186
    %s188 = sphi 0, %s186
    %s189 = sphi 0, %s188
    %s203 = sphi 0, %s189
    %s207 = sphi 0, %s207
    %s209 = sphi 0, %s207
    %s210 = sphi 0, %s209
    %s224 = sphi 0, %s210
    %s228 = sphi 0, %s228
    %s230 = sphi 0, %s228
    %s231 = sphi 0, %s230
    %s245 = sphi 0, %s231
    %s249 = sphi 0, %s249
    %s251 = sphi 0, %s249
    %s252 = sphi 0, %s251
    %s266 = sphi 0, %s252
    %s270 = sphi 0, %s270
    %s272 = sphi 0, %s270
    %s273 = sphi 0, %s272
    %s287 = sphi 0, %s273
    %s291 = sphi 0, %s291
    %s293 = sphi 0, %s291
    %s294 = sphi 0, %s293
    %s308 = sphi 0, %s294
    %s314 = sphi 0, %s316
    %s317 = sphi 0, %s314
    %s318 = sphi 0, %s317
    %s334 = sphi 0, %s318
    %s340 = sphi 0, %s342
    %s343 = sphi 0, %s340
    %s344 = sphi 0, %s343
    %s360 = sphi 0, %s344
  $region4: #{forward_impl.1} parent=0 // loop_header_branch
    %24 = sbr.rel (%p22) target = $region8
  $region5: #{forward_impl.1} parent=0 // loop_body
    %s26 = ssub.s32 %s21, 1
    %s27 = ssub.s32 %s21, 2
    %s28 = sadd.s32 %s21, 1
    %s29 = ssub.s32 %s21, %s28
    %p30 = scmp.eq.s32.totalorder %s29, 0
    %s32 = sadd.s32 %s31, 1
    %s33 = scalar_select %p30, %s31, %s32
    %p36 = pneg %p30
    %p37 = scmp.eq.s32.totalorder %s21, 1
    %p38 = por %p36, %p37
    %p39 = scmp.ne.s32.totalorder %s31, %s34
    %p40 = scmp.eq.s32.totalorder %s21, 0
    %p41 = por %p39, %p40
    %p42 = scmp.ne.s32.totalorder %s31, %s34
    %p43 = scmp.eq.s32.totalorder %s26, 1
    %p44 = por %p42, %p43
    %p45 = scmp.ne.s32.totalorder %s34, %s35
    %p46 = scmp.eq.s32.totalorder %s26, 0
    %p47 = por %p45, %p46
    %p48 = scmp.ne.s32.totalorder %s34, %s35
    %p49 = scmp.eq.s32.totalorder %s27, 1
    %p50 = por %p48, %p49
    %p52 = scmp.ne.s32.totalorder %s35, %s51
    %p53 = scmp.eq.s32.totalorder %s27, 0
    %p54 = por %p52, %p53
    %s55 = ssub.s32 %s21, %s28
    %p56 = scmp.eq.s32.totalorder %s55, 0
    %s58 = sadd.s32 %s57, 1
    %s59 = scalar_select %p56, %s57, %s58
    %p62 = pneg %p56
    %p63 = scmp.eq.s32.totalorder %s21, 1
    %p64 = por %p62, %p63
    %p65 = scmp.ne.s32.totalorder %s57, %s60
    %p66 = scmp.eq.s32.totalorder %s21, 0
    %p67 = por %p65, %p66
    %p68 = scmp.ne.s32.totalorder %s57, %s60
    %p69 = scmp.eq.s32.totalorder %s26, 1
    %p70 = por %p68, %p69
    %p71 = scmp.ne.s32.totalorder %s60, %s61
    %p72 = scmp.eq.s32.totalorder %s26, 0
    %p73 = por %p71, %p72
    %p74 = scmp.ne.s32.totalorder %s60, %s61
    %p75 = scmp.eq.s32.totalorder %s27, 1
    %p76 = por %p74, %p75
    %p78 = scmp.ne.s32.totalorder %s61, %s77
    %p79 = scmp.eq.s32.totalorder %s27, 0
    %p80 = por %p78, %p79
    %s82 = sadd.s32 %s81, 1
    %p85 = scmp.eq.s32.totalorder %s21, 1
    %p86 = scmp.ne.s32.totalorder %s81, %s83
    %p87 = scmp.eq.s32.totalorder %s21, 0
    %p88 = por %p86, %p87
    %p89 = scmp.ne.s32.totalorder %s81, %s83
    %p90 = scmp.eq.s32.totalorder %s26, 1
    %p91 = por %p89, %p90
    %p92 = scmp.ne.s32.totalorder %s83, %s84
    %p93 = scmp.eq.s32.totalorder %s26, 0
    %p94 = por %p92, %p93
    %p95 = scmp.ne.s32.totalorder %s83, %s84
    %p96 = scmp.eq.s32.totalorder %s27, 1
    %p97 = por %p95, %p96
    %p99 = scmp.ne.s32.totalorder %s84, %s98
    %p100 = scmp.eq.s32.totalorder %s27, 0
    %p101 = por %p99, %p100
    %s103 = sadd.s32 %s102, 1
    %p106 = scmp.eq.s32.totalorder %s21, 1
    %p107 = scmp.ne.s32.totalorder %s102, %s104
    %p108 = scmp.eq.s32.totalorder %s21, 0
    %p109 = por %p107, %p108
    %p110 = scmp.ne.s32.totalorder %s102, %s104
    %p111 = scmp.eq.s32.totalorder %s26, 1
    %p112 = por %p110, %p111
    %p113 = scmp.ne.s32.totalorder %s104, %s105
    %p114 = scmp.eq.s32.totalorder %s26, 0
    %p115 = por %p113, %p114
    %p116 = scmp.ne.s32.totalorder %s104, %s105
    %p117 = scmp.eq.s32.totalorder %s27, 1
    %p118 = por %p116, %p117
    %p120 = scmp.ne.s32.totalorder %s105, %s119
    %p121 = scmp.eq.s32.totalorder %s27, 0
    %p122 = por %p120, %p121
    %s124 = sadd.s32 %s123, 1
    %p127 = scmp.eq.s32.totalorder %s21, 1
    %p128 = scmp.ne.s32.totalorder %s123, %s125
    %p129 = scmp.eq.s32.totalorder %s21, 0
    %p130 = por %p128, %p129
    %p131 = scmp.ne.s32.totalorder %s123, %s125
    %p132 = scmp.eq.s32.totalorder %s26, 1
    %p133 = por %p131, %p132
    %p134 = scmp.ne.s32.totalorder %s125, %s126
    %p135 = scmp.eq.s32.totalorder %s26, 0
    %p136 = por %p134, %p135
    %p137 = scmp.ne.s32.totalorder %s125, %s126
    %p138 = scmp.eq.s32.totalorder %s27, 1
    %p139 = por %p137, %p138
    %p141 = scmp.ne.s32.totalorder %s126, %s140
    %p142 = scmp.eq.s32.totalorder %s27, 0
    %p143 = por %p141, %p142
    %s145 = sadd.s32 %s144, 1
    %p148 = scmp.eq.s32.totalorder %s21, 1
    %p149 = scmp.ne.s32.totalorder %s144, %s146
    %p150 = scmp.eq.s32.totalorder %s21, 0
    %p151 = por %p149, %p150
    %p152 = scmp.ne.s32.totalorder %s144, %s146
    %p153 = scmp.eq.s32.totalorder %s26, 1
    %p154 = por %p152, %p153
    %p155 = scmp.ne.s32.totalorder %s146, %s147
    %p156 = scmp.eq.s32.totalorder %s26, 0
    %p157 = por %p155, %p156
    %p158 = scmp.ne.s32.totalorder %s146, %s147
    %p159 = scmp.eq.s32.totalorder %s27, 1
    %p160 = por %p158, %p159
    %p162 = scmp.ne.s32.totalorder %s147, %s161
    %p163 = scmp.eq.s32.totalorder %s27, 0
    %p164 = por %p162, %p163
    %s166 = sadd.s32 %s165, 1
    %p169 = scmp.eq.s32.totalorder %s21, 1
    %p170 = scmp.ne.s32.totalorder %s165, %s167
    %p171 = scmp.eq.s32.totalorder %s21, 0
    %p172 = por %p170, %p171
    %p173 = scmp.ne.s32.totalorder %s165, %s167
    %p174 = scmp.eq.s32.totalorder %s26, 1
    %p175 = por %p173, %p174
    %p176 = scmp.ne.s32.totalorder %s167, %s168
    %p177 = scmp.eq.s32.totalorder %s26, 0
    %p178 = por %p176, %p177
    %p179 = scmp.ne.s32.totalorder %s167, %s168
    %p180 = scmp.eq.s32.totalorder %s27, 1
    %p181 = por %p179, %p180
    %p183 = scmp.ne.s32.totalorder %s168, %s182
    %p184 = scmp.eq.s32.totalorder %s27, 0
    %p185 = por %p183, %p184
    %s187 = sadd.s32 %s186, 1
    %p190 = scmp.eq.s32.totalorder %s21, 1
    %p191 = scmp.ne.s32.totalorder %s186, %s188
    %p192 = scmp.eq.s32.totalorder %s21, 0
    %p193 = por %p191, %p192
    %p194 = scmp.ne.s32.totalorder %s186, %s188
    %p195 = scmp.eq.s32.totalorder %s26, 1
    %p196 = por %p194, %p195
    %p197 = scmp.ne.s32.totalorder %s188, %s189
    %p198 = scmp.eq.s32.totalorder %s26, 0
    %p199 = por %p197, %p198
    %p200 = scmp.ne.s32.totalorder %s188, %s189
    %p201 = scmp.eq.s32.totalorder %s27, 1
    %p202 = por %p200, %p201
    %p204 = scmp.ne.s32.totalorder %s189, %s203
    %p205 = scmp.eq.s32.totalorder %s27, 0
    %p206 = por %p204, %p205
    %s208 = sadd.s32 %s207, 1
    %p211 = scmp.eq.s32.totalorder %s21, 1
    %p212 = scmp.ne.s32.totalorder %s207, %s209
    %p213 = scmp.eq.s32.totalorder %s21, 0
    %p214 = por %p212, %p213
    %p215 = scmp.ne.s32.totalorder %s207, %s209
    %p216 = scmp.eq.s32.totalorder %s26, 1
    %p217 = por %p215, %p216
    %p218 = scmp.ne.s32.totalorder %s209, %s210
    %p219 = scmp.eq.s32.totalorder %s26, 0
    %p220 = por %p218, %p219
    %p221 = scmp.ne.s32.totalorder %s209, %s210
    %p222 = scmp.eq.s32.totalorder %s27, 1
    %p223 = por %p221, %p222
    %p225 = scmp.ne.s32.totalorder %s210, %s224
    %p226 = scmp.eq.s32.totalorder %s27, 0
    %p227 = por %p225, %p226
    %s229 = sadd.s32 %s228, 1
    %p232 = scmp.eq.s32.totalorder %s21, 1
    %p233 = scmp.ne.s32.totalorder %s228, %s230
    %p234 = scmp.eq.s32.totalorder %s21, 0
    %p235 = por %p233, %p234
    %p236 = scmp.ne.s32.totalorder %s228, %s230
    %p237 = scmp.eq.s32.totalorder %s26, 1
    %p238 = por %p236, %p237
    %p239 = scmp.ne.s32.totalorder %s230, %s231
    %p240 = scmp.eq.s32.totalorder %s26, 0
    %p241 = por %p239, %p240
    %p242 = scmp.ne.s32.totalorder %s230, %s231
    %p243 = scmp.eq.s32.totalorder %s27, 1
    %p244 = por %p242, %p243
    %p246 = scmp.ne.s32.totalorder %s231, %s245
    %p247 = scmp.eq.s32.totalorder %s27, 0
    %p248 = por %p246, %p247
    %s250 = sadd.s32 %s249, 1
    %p253 = scmp.eq.s32.totalorder %s21, 1
    %p254 = scmp.ne.s32.totalorder %s249, %s251
    %p255 = scmp.eq.s32.totalorder %s21, 0
    %p256 = por %p254, %p255
    %p257 = scmp.ne.s32.totalorder %s249, %s251
    %p258 = scmp.eq.s32.totalorder %s26, 1
    %p259 = por %p257, %p258
    %p260 = scmp.ne.s32.totalorder %s251, %s252
    %p261 = scmp.eq.s32.totalorder %s26, 0
    %p262 = por %p260, %p261
    %p263 = scmp.ne.s32.totalorder %s251, %s252
    %p264 = scmp.eq.s32.totalorder %s27, 1
    %p265 = por %p263, %p264
    %p267 = scmp.ne.s32.totalorder %s252, %s266
    %p268 = scmp.eq.s32.totalorder %s27, 0
    %p269 = por %p267, %p268
    %s271 = sadd.s32 %s270, 1
    %p274 = scmp.eq.s32.totalorder %s21, 1
    %p275 = scmp.ne.s32.totalorder %s270, %s272
    %p276 = scmp.eq.s32.totalorder %s21, 0
    %p277 = por %p275, %p276
    %p278 = scmp.ne.s32.totalorder %s270, %s272
    %p279 = scmp.eq.s32.totalorder %s26, 1
    %p280 = por %p278, %p279
    %p281 = scmp.ne.s32.totalorder %s272, %s273
    %p282 = scmp.eq.s32.totalorder %s26, 0
    %p283 = por %p281, %p282
    %p284 = scmp.ne.s32.totalorder %s272, %s273
    %p285 = scmp.eq.s32.totalorder %s27, 1
    %p286 = por %p284, %p285
    %p288 = scmp.ne.s32.totalorder %s273, %s287
    %p289 = scmp.eq.s32.totalorder %s27, 0
    %p290 = por %p288, %p289
    %s292 = sadd.s32 %s291, 1
    %p295 = scmp.eq.s32.totalorder %s21, 1
    %p296 = scmp.ne.s32.totalorder %s291, %s293
    %p297 = scmp.eq.s32.totalorder %s21, 0
    %p298 = por %p296, %p297
    %p299 = scmp.ne.s32.totalorder %s291, %s293
    %p300 = scmp.eq.s32.totalorder %s26, 1
    %p301 = por %p299, %p300
    %p302 = scmp.ne.s32.totalorder %s293, %s294
    %p303 = scmp.eq.s32.totalorder %s26, 0
    %p304 = por %p302, %p303
    %p305 = scmp.ne.s32.totalorder %s293, %s294
    %p306 = scmp.eq.s32.totalorder %s27, 1
    %p307 = por %p305, %p306
    %p309 = scmp.ne.s32.totalorder %s294, %s308
    %p310 = scmp.eq.s32.totalorder %s27, 0
    %p311 = por %p309, %p310
    %s312 = ssub.s32 %s21, %s28
    %p313 = scmp.eq.s32.totalorder %s312, 0
    %s315 = sadd.s32 %s314, 1
    %s316 = scalar_select %p313, %s314, %s315
    %p319 = pneg %p313
    %p320 = scmp.eq.s32.totalorder %s21, 1
    %p321 = por %p319, %p320
    %p322 = scmp.ne.s32.totalorder %s314, %s317
    %p323 = scmp.eq.s32.totalorder %s21, 0
    %p324 = por %p322, %p323
    %p325 = scmp.ne.s32.totalorder %s314, %s317
    %p326 = scmp.eq.s32.totalorder %s26, 1
    %p327 = por %p325, %p326
    %p328 = scmp.ne.s32.totalorder %s317, %s318
    %p329 = scmp.eq.s32.totalorder %s26, 0
    %p330 = por %p328, %p329
    %p331 = scmp.ne.s32.totalorder %s317, %s318
    %p332 = scmp.eq.s32.totalorder %s27, 1
    %p333 = por %p331, %p332
    %p335 = scmp.ne.s32.totalorder %s318, %s334
    %p336 = scmp.eq.s32.totalorder %s27, 0
    %p337 = por %p335, %p336
    %s338 = ssub.s32 %s21, %s28
    %p339 = scmp.eq.s32.totalorder %s338, 0
    %s341 = sadd.s32 %s340, 1
    %s342 = scalar_select %p339, %s340, %s341
    %p345 = pneg %p339
    %p346 = scmp.eq.s32.totalorder %s21, 1
    %p347 = por %p345, %p346
    %p348 = scmp.ne.s32.totalorder %s340, %s343
    %p349 = scmp.eq.s32.totalorder %s21, 0
    %p350 = por %p348, %p349
    %p351 = scmp.ne.s32.totalorder %s340, %s343
    %p352 = scmp.eq.s32.totalorder %s26, 1
    %p353 = por %p351, %p352
    %p354 = scmp.ne.s32.totalorder %s343, %s344
    %p355 = scmp.eq.s32.totalorder %s26, 0
    %p356 = por %p354, %p355
    %p357 = scmp.ne.s32.totalorder %s343, %s344
    %p358 = scmp.eq.s32.totalorder %s27, 1
    %p359 = por %p357, %p358
    %p361 = scmp.ne.s32.totalorder %s344, %s360
    %p362 = scmp.eq.s32.totalorder %s27, 0
    %p363 = por %p361, %p362
    %p364 = scmp.le.s32.totalorder 1, %s21
    %p365 = scmp.lt.s32.totalorder %s21, 3
    %p366 = pnand %p364, %p365
    %p367 = pneg %p366
    // Predicated region
    $region9: #{forward_impl.1} parent=5 // pred_check
      _
    $region10: #{forward_impl.1} parent=5 // pred_check_branch
      %369 = sbr.rel (%p366) target = $region12
    $region11: #{forward_impl.1} parent=5 // pred_region
      %s370 = ssub.s32 %s21, 1
      // Predicated region
      $region13: #{forward_impl.1} parent=11 // pred_check
        %p371 = pneg %p94
      $region14: #{forward_impl.1} parent=11 // pred_check_branch
        %373 = sbr.rel (%p371) target = $region16
      $region15: #{forward_impl.1} parent=11 // pred_region
        _
      $region16: #{forward_impl.1} parent=11 // pred_fallthru
        _
      // Predicated region
      $region17: #{forward_impl.1} parent=11 // pred_check
        %p374 = pneg %p115
      $region18: #{forward_impl.1} parent=11 // pred_check_branch
        %376 = sbr.rel (%p374) target = $region20
      $region19: #{forward_impl.1} parent=11 // pred_region
        _
      $region20: #{forward_impl.1} parent=11 // pred_fallthru
        _
      // Predicated region
      $region21: #{forward_impl.1} parent=11 // pred_check
        %p377 = pneg %p136
      $region22: #{forward_impl.1} parent=11 // pred_check_branch
        %379 = sbr.rel (%p377) target = $region24
      $region23: #{forward_impl.1} parent=11 // pred_region
        _
      $region24: #{forward_impl.1} parent=11 // pred_fallthru
        _
      // Predicated region
      $region25: #{forward_impl.1} parent=11 // pred_check
        %p380 = pneg %p157
      $region26: #{forward_impl.1} parent=11 // pred_check_branch
        %382 = sbr.rel (%p380) target = $region28
      $region27: #{forward_impl.1} parent=11 // pred_region
        _
      $region28: #{forward_impl.1} parent=11 // pred_fallthru
        _
      // Predicated region
      $region29: #{forward_impl.1} parent=11 // pred_check
        %p383 = pneg %p178
      $region30: #{forward_impl.1} parent=11 // pred_check_branch
        %385 = sbr.rel (%p383) target = $region32
      $region31: #{forward_impl.1} parent=11 // pred_region
        _
      $region32: #{forward_impl.1} parent=11 // pred_fallthru
        _
      // Predicated region
      $region33: #{forward_impl.1} parent=11 // pred_check
        %p386 = pneg %p199
      $region34: #{forward_impl.1} parent=11 // pred_check_branch
        %388 = sbr.rel (%p386) target = $region36
      $region35: #{forward_impl.1} parent=11 // pred_region
        _
      $region36: #{forward_impl.1} parent=11 // pred_fallthru
        _
      // Predicated region
      $region37: #{forward_impl.1} parent=11 // pred_check
        %p389 = pneg %p220
      $region38: #{forward_impl.1} parent=11 // pred_check_branch
        %391 = sbr.rel (%p389) target = $region40
      $region39: #{forward_impl.1} parent=11 // pred_region
        _
      $region40: #{forward_impl.1} parent=11 // pred_fallthru
        _
      // Predicated region
      $region41: #{forward_impl.1} parent=11 // pred_check
        %p392 = pneg %p241
      $region42: #{forward_impl.1} parent=11 // pred_check_branch
        %394 = sbr.rel (%p392) target = $region44
      $region43: #{forward_impl.1} parent=11 // pred_region
        _
      $region44: #{forward_impl.1} parent=11 // pred_fallthru
        _
      // Predicated region
      $region45: #{forward_impl.1} parent=11 // pred_check
        %p395 = pneg %p262
      $region46: #{forward_impl.1} parent=11 // pred_check_branch
        %397 = sbr.rel (%p395) target = $region48
      $region47: #{forward_impl.1} parent=11 // pred_region
        _
      $region48: #{forward_impl.1} parent=11 // pred_fallthru
        _
      // Predicated region
      $region49: #{forward_impl.1} parent=11 // pred_check
        %p398 = pneg %p283
      $region50: #{forward_impl.1} parent=11 // pred_check_branch
        %400 = sbr.rel (%p398) target = $region52
      $region51: #{forward_impl.1} parent=11 // pred_region
        _
      $region52: #{forward_impl.1} parent=11 // pred_fallthru
        _
      // Predicated region
      $region53: #{forward_impl.1} parent=11 // pred_check
        %p401 = pneg %p304
      $region54: #{forward_impl.1} parent=11 // pred_check_branch
        %403 = sbr.rel (%p401) target = $region56
      $region55: #{forward_impl.1} parent=11 // pred_region
        _
      $region56: #{forward_impl.1} parent=11 // pred_fallthru
        _
    $region12: #{forward_impl.1} parent=5 // pred_fallthru
      _
    %p404 = scmp.lt.s32.totalorder %s21, 2
    // Predicated region
    $region57: #{forward_impl.1} parent=5 // pred_check
      %p405 = pneg %p404
    $region58: #{forward_impl.1} parent=5 // pred_check_branch
      %407 = sbr.rel (%p405) target = $region60
    $region59: #{forward_impl.1} parent=5 // pred_region
      // Predicated region
      $region61: #{forward_impl.1} parent=59 // pred_check
        %p408 = pneg %p41
      $region62: #{forward_impl.1} parent=59 // pred_check_branch
        %410 = sbr.rel (%p408) target = $region64
      $region63: #{forward_impl.1} parent=59 // pred_region
        %p411 = scmp.lt.s32.totalorder %s21, 1
        %s412 = scalar_select %p411, %s21, 1
        %s413 = smul.addr %s412, 2
        %s414 = smul.addr %s413, 8
        %s415 = scalar_lea.vmem %s0, %s414
      $region64: #{forward_impl.1} parent=59 // pred_fallthru
        _
      // Predicated region
      $region65: #{forward_impl.1} parent=59 // pred_check
        %p416 = pneg %p67
      $region66: #{forward_impl.1} parent=59 // pred_check_branch
        %418 = sbr.rel (%p416) target = $region68
      $region67: #{forward_impl.1} parent=59 // pred_region
        %p419 = scmp.lt.s32.totalorder %s21, 1
        %s420 = scalar_select %p419, %s21, 1
        %s421 = smul.addr %s420, 2
        %s422 = smul.addr %s421, 8
        %s423 = scalar_lea.vmem %s1, %s422
      $region68: #{forward_impl.1} parent=59 // pred_fallthru
        _
    $region60: #{forward_impl.1} parent=5 // pred_fallthru
      _
    %p424 = scmp.le.s32.totalorder 1, %s21
    %p425 = scmp.lt.s32.totalorder %s21, 3
    %p426 = pnand %p424, %p425
    %p427 = pneg %p426
    // Predicated region
    $region69: #{forward_impl.1} parent=5 // pred_check
      _
    $region70: #{forward_impl.1} parent=5 // pred_check_branch
      %429 = sbr.rel (%p426) target = $region72
    $region71: #{forward_impl.1} parent=5 // pred_region
      %s430 = ssub.s32 %s21, 1
      %p431 = scmp.lt.s32.totalorder %s26, 1
      %s432 = scalar_select %p431, %s26, 1
      %s433 = smul.addr %s432, 2
      %s434 = smul.addr %s433, 8
      %s435 = scalar_lea.vmem %s0, %s434
      %p436 = pneg %p47
      %p437 = pneg %p44
      %p438 = scmp.lt.s32.totalorder %s26, 1
      %s439 = scalar_select %p438, %s26, 1
      %s440 = smul.addr %s439, 2
      %s441 = smul.addr %s440, 8
      %s442 = scalar_lea.vmem %s1, %s441
      %p443 = pneg %p73
      %p444 = pneg %p70
      %p445 = pneg %p94
      %p446 = pneg %p91
      %p447 = pneg %p115
      %p448 = pneg %p112
      %p449 = pneg %p136
      %p450 = pneg %p133
      %p451 = pneg %p157
      %p452 = pneg %p154
      %p453 = pneg %p178
      %p454 = pneg %p175
      %p455 = pneg %p199
      %p456 = pneg %p196
      %p457 = pneg %p220
      %p458 = pneg %p217
      %p459 = pneg %p241
      %p460 = pneg %p238
      %p461 = pneg %p262
      %p462 = pneg %p259
      %p463 = pneg %p283
      %p464 = pneg %p280
      %p465 = pneg %p304
      %p466 = pneg %p301
      %p467 = pneg %p330
      %p468 = pneg %p327
      %p469 = scmp.lt.s32.totalorder %s26, 1
      %s470 = scalar_select %p469, %s26, 1
      %s471 = smul.addr %s470, 2
      %s472 = smul.addr %s471, 8
      %s473 = scalar_lea.vmem %s13, %s472
      %p474 = pneg %p356
      %p475 = pneg %p353
      %p476 = scmp.lt.s32.totalorder %s26, 1
      %s477 = scalar_select %p476, %s26, 1
      %s478 = smul.addr %s477, 4
      %s479 = smul.addr %s478, 8
      %s480 = scalar_lea.vmem %s14, %s479
      %p481 = scmp.lt.s32.totalorder %s26, 1
      %s482 = scalar_select %p481, %s26, 1
      %s483 = smul.addr %s482, 2
      %s484 = smul.addr %s483, 8
      %s485 = scalar_lea.vmem %s0, %s484
      %p486 = scmp.lt.s32.totalorder %s26, 1
      %s487 = scalar_select %p486, %s26, 1
      %s488 = smul.addr %s487, 2
      %s489 = smul.addr %s488, 8
      %s490 = scalar_lea.vmem %s1, %s489
      %p491 = scmp.lt.s32.totalorder %s26, 1
      %s492 = scalar_select %p491, %s26, 1
      %s493 = smul.addr %s492, 2
      %s494 = smul.addr %s493, 8
      %s495 = scalar_lea.vmem %s13, %s494
      %p496 = scmp.lt.s32.totalorder %s26, 1
      %s497 = scalar_select %p496, %s26, 1
      %s498 = smul.addr %s497, 4
      %s499 = smul.addr %s498, 8
      %s500 = scalar_lea.vmem %s14, %s499
      %502 = vst [vmem:[#allocation2] sm:$0xff] 0.0
      %503 = vst [vmem:[#allocation2 + $0x8] sm:$0xff] 0.0
      %vm504 = vcmask 277504
      %505 = vst.msk [vmem:[#allocation2 + $0x10] sm:$0xff] %vm504, 0.0
      %v506 = vld [vmem:[%s485] sm:$0xff]
      %v507 = vld [vmem:[%s485 + $0x8] sm:$0xff]
      %v508 = vld [vmem:[%s4] sm:$0xff]
      %511 = vrot.lane.b32.xlu0 %v506, 17
      %v512 = vpop.permute.xlu0 %511
      %513 = vrot.lane.b32.xlu0 %v507, 17
      %v514 = vpop.permute.xlu0 %513
      %vm515 = vcmask 138240
      %v516 = vsel %vm515, %v512, %v514
      %vm520 = vcmask 1047688
      %521 = vst.msk [vmem:[#allocation2] sm:$0xff] %vm520, %v512
      %522 = vst [vmem:[#allocation2 + $0x8] sm:$0xff] %v516
      %523 = vst.msk [vmem:[#allocation2 + $0x10] sm:$0xff] %vm515, %v514
      %v524 = vld [vmem:[#allocation2] sm:$0xff]
      %v525 = vld [vmem:[#allocation2 + $0x8] sm:$0xff]
      %v526 = vld [vmem:[%s2] sm:$0x3]
      %v528 = vperm.slane %v526, 0
      %v529 = vperm.slane %v526, 1
      %v532 = vmul.f32 %v524, %v528
      %v533 = vmul.f32 %v525, %v529
      %v534 = vld [vmem:[#allocation2 + $0x10] sm:$0xff]
      %s535 = scalar_lea.vmem %s2, 2
      %v536 = vld [vmem:[%s535] sm:$0x3]
      %v538 = vperm.slane %v536, 0
      %v539 = vperm.slane %v536, 1
      %540 = vrot.lane.b32.xlu0 %v538, 2
      %v541 = vpop.permute.xlu0 %540
      %542 = vrot.lane.b32.xlu0 %v539, 2
      %v543 = vpop.permute.xlu0 %542
      %vm544 = vcmask 15360
      %v545 = vsel %vm544, %v541, %v543
      %v549 = vmul.f32 %v524, %v541
      %v550 = vmul.f32 %v525, %v545
      %v551 = vmul.f32 %v534, %v543
      %552 = vrot.lane.b32.xlu0 %v528, 16
      %v553 = vpop.permute.xlu0 %552
      %554 = vrot.lane.b32.xlu0 %v529, 16
      %v555 = vpop.permute.xlu0 %554
      %vm556 = vcmask 130048
      %v557 = vsel %vm556, %v553, %v555
      %v561 = vmul.f32 %v524, %v553
      %v562 = vmul.f32 %v525, %v557
      %v563 = vmul.f32 %v534, %v555
      %564 = vrot.lane.b32.xlu0 %v538, 18
      %v565 = vpop.permute.xlu0 %564
      %566 = vrot.lane.b32.xlu0 %v539, 18
      %v567 = vpop.permute.xlu0 %566
      %vm568 = vcmask 146432
      %v569 = vsel %vm568, %v565, %v567
      %v573 = vmul.f32 %v524, %v565
      %v574 = vmul.f32 %v525, %v569
      %v575 = vmul.f32 %v534, %v567
      %576 = vrot.lane.b32.xlu0 %v528, 32
      %v577 = vpop.permute.xlu0 %576
      %578 = vrot.lane.b32.xlu0 %v529, 32
      %v579 = vpop.permute.xlu0 %578
      %vm580 = vcmask 261120
      %v581 = vsel %vm580, %v577, %v579
      %v585 = vmul.f32 %v524, %v577
      %v586 = vmul.f32 %v525, %v581
      %v587 = vmul.f32 %v534, %v579
      %588 = vrot.lane.b32.xlu0 %v538, 34
      %v589 = vpop.permute.xlu0 %588
      %590 = vrot.lane.b32.xlu0 %v539, 34
      %v591 = vpop.permute.xlu0 %590
      %v592 = vsel %vm504, %v589, %v591
      %v596 = vmul.f32 %v524, %v589
      %v597 = vmul.f32 %v525, %v592
      %v598 = vmul.f32 %v534, %v591
      %602 = vrot.lane.b32.xlu0 %v524, 127
      %v603 = vpop.permute.xlu0 %602
      %604 = vrot.lane.b32.xlu0 %v525, 127
      %v605 = vpop.permute.xlu0 %604
      %606 = vrot.lane.b32.xlu0 %v534, 127
      %v607 = vpop.permute.xlu0 %606
      %vm608 = vcmask 1039360
      %v609 = vsel %vm608, %v603, %v605
      %v610 = vsel %vm608, %v605, %v607
      %616 = vrot.lane.b32.xlu0 %v549, 126
      %v617 = vpop.permute.xlu0 %616
      %618 = vrot.lane.b32.xlu0 %v550, 126
      %v619 = vpop.permute.xlu0 %618
      %620 = vrot.lane.b32.xlu0 %v551, 126
      %v621 = vpop.permute.xlu0 %620
      %vm622 = vcmask 1031168
      %v623 = vsel %vm622, %v617, %v619
      %v624 = vsel %vm622, %v619, %v621
      %630 = vrot.lane.b32.xlu0 %v561, 112
      %v631 = vpop.permute.xlu0 %630
      %632 = vrot.lane.b32.xlu0 %v562, 112
      %v633 = vpop.permute.xlu0 %632
      %634 = vrot.lane.b32.xlu0 %v563, 112
      %v635 = vpop.permute.xlu0 %634
      %vm636 = vcmask 916480
      %v637 = vsel %vm636, %v631, %v633
      %v638 = vsel %vm636, %v633, %v635
      %641 = vrot.lane.b32.xlu0 %v524, 111
      %v642 = vpop.permute.xlu0 %641
      %643 = vrot.lane.b32.xlu0 %v525, 111
      %v644 = vpop.permute.xlu0 %643
      %645 = vrot.lane.b32.xlu0 %v534, 111
      %v646 = vpop.permute.xlu0 %645
      %vm647 = vcmask 908288
      %v648 = vsel %vm647, %v642, %v644
      %v649 = vsel %vm647, %v644, %v646
      %655 = vrot.lane.b32.xlu0 %v573, 110
      %v656 = vpop.permute.xlu0 %655
      %657 = vrot.lane.b32.xlu0 %v574, 110
      %v658 = vpop.permute.xlu0 %657
      %659 = vrot.lane.b32.xlu0 %v575, 110
      %v660 = vpop.permute.xlu0 %659
      %vm661 = vcmask 900096
      %v662 = vsel %vm661, %v656, %v658
      %v663 = vsel %vm661, %v658, %v660
      %669 = vrot.lane.b32.xlu0 %v585, 96
      %v670 = vpop.permute.xlu0 %669
      %671 = vrot.lane.b32.xlu0 %v586, 96
      %v672 = vpop.permute.xlu0 %671
      %673 = vrot.lane.b32.xlu0 %v587, 96
      %v674 = vpop.permute.xlu0 %673
      %vm675 = vcmask 785408
      %v676 = vsel %vm675, %v670, %v672
      %v677 = vsel %vm675, %v672, %v674
      %680 = vrot.lane.b32.xlu0 %v524, 95
      %v681 = vpop.permute.xlu0 %680
      %682 = vrot.lane.b32.xlu0 %v525, 95
      %v683 = vpop.permute.xlu0 %682
      %684 = vrot.lane.b32.xlu0 %v534, 95
      %v685 = vpop.permute.xlu0 %684
      %vm686 = vcmask 777216
      %v687 = vsel %vm686, %v681, %v683
      %v688 = vsel %vm686, %v683, %v685
      %694 = vrot.lane.b32.xlu0 %v596, 94
      %v695 = vpop.permute.xlu0 %694
      %696 = vrot.lane.b32.xlu0 %v597, 94
      %v697 = vpop.permute.xlu0 %696
      %698 = vrot.lane.b32.xlu0 %v598, 94
      %v699 = vpop.permute.xlu0 %698
      %vm700 = vcmask 769024
      %v701 = vsel %vm700, %v695, %v697
      %v702 = vsel %vm700, %v697, %v699
      %v705 = vpack.c.bf16 %v609, %v532
      %v706 = vpack.c.bf16 %v610, %v533
      %v707 = vpack.c.bf16 %v637, %v623
      %v708 = vpack.c.bf16 %v638, %v624
      %v709 = vpack.c.bf16 %v662, %v648
      %v710 = vpack.c.bf16 %v663, %v649
      %v711 = vpack.c.bf16 %v687, %v676
      %v712 = vpack.c.bf16 %v688, %v677
      %v713 = vpack.c.bf16 %v701, %v701
      %v714 = vpack.c.bf16 %v702, %v702
      %v715 = vld [vmem:[%s3] sm:$0xf]
      %717 = vset.pattern.permute.xlu0 0
      %718 = vperm.xlu0 %717, %v508
      %v719 = vpop.permute.xlu0 %718
      %vm721 = vcmask 588800
      %v723 = vsel %vm721, %v715, 0
      %vm725 = vcmask 1043456
      %v727 = vsel %vm725, %v713, 0
      %v730 = vsel %vm725, %v714, 0
      %732 = vmatpush.bf16.msra.mxu0 0
      %733 = vmatpush.bf16.msra.mxu0 0
      %734 = vmatpush.bf16.msra.mxu0 0
      %735 = vmatpush.bf16.msra.mxu0 %v727
      %736 = vmatpush.bf16.msra.mxu0 %v711
      %737 = vmatpush.bf16.msra.mxu0 %v709
      %738 = vmatpush.bf16.msra.mxu0 %v707
      %739 = vmatpush.bf16.msra.mxu0 %v705
      %740 = vmatmul.bf16.gmra.mxu0 %v723
      %v741 = vpop.f32.mrf.mxu0
      %v742 = vadd.f32 %v719, %v741
      %v743 = vpop.f32.mrf.mxu0
      %744 = vdwg.mxu0
      %745 = vmatpush.bf16.msra.mxu0 0
      %746 = vmatpush.bf16.msra.mxu0 0
      %747 = vmatpush.bf16.msra.mxu0 0
      %748 = vmatpush.bf16.msra.mxu0 %v730
      %749 = vmatpush.bf16.msra.mxu0 %v712
      %750 = vmatpush.bf16.msra.mxu0 %v710
      %751 = vmatpush.bf16.msra.mxu0 %v708
      %752 = vmatpush.bf16.msra.mxu0 %v706
      %753 = vmatmul.bf16.gmra.mxu0 %v723
      %v754 = vpop.f32.mrf.mxu0
      %v755 = vadd.f32 %v719, %v754
      %v756 = vpop.f32.mrf.mxu0
      %757 = vdwg.mxu0
      %v758 = vmax.f32 %v742, 0.0
      %v759 = vmax.f32 %v755, 0.0
      %762 = vrot.lane.b32.xlu0 %v758, 17
      %v763 = vpop.permute.xlu0 %762
      %764 = vrot.lane.b32.xlu0 %v759, 17
      %v765 = vpop.permute.xlu0 %764
      %v766 = vsel %vm515, %v763, %v765
      %770 = vst.msk [vmem:[#allocation2] sm:$0xff] %vm520, %v763
      %771 = vst [vmem:[#allocation2 + $0x8] sm:$0xff] %v766
      %772 = vst.msk [vmem:[#allocation2 + $0x10] sm:$0xff] %vm515, %v765
      %v773 = vld [vmem:[#allocation2] sm:$0xff]
      %v774 = vld [vmem:[#allocation2 + $0x8] sm:$0xff]
      %v775 = vld [vmem:[%s2] sm:$0x3]
      %v777 = vperm.slane %v775, 0
      %v778 = vperm.slane %v775, 1
      %v781 = vmul.f32 %v773, %v777
      %v782 = vmul.f32 %v774, %v778
      %v783 = vld [vmem:[#allocation2 + $0x10] sm:$0xff]
      %v784 = vld [vmem:[%s535] sm:$0x3]
      %v786 = vperm.slane %v784, 0
      %v787 = vperm.slane %v784, 1
      %788 = vrot.lane.b32.xlu0 %v786, 2
      %v789 = vpop.permute.xlu0 %788
      %790 = vrot.lane.b32.xlu0 %v787, 2
      %v791 = vpop.permute.xlu0 %790
      %v792 = vsel %vm544, %v789, %v791
      %v796 = vmul.f32 %v773, %v789
      %v797 = vmul.f32 %v774, %v792
      %v798 = vmul.f32 %v783, %v791
      %799 = vrot.lane.b32.xlu0 %v777, 16
      %v800 = vpop.permute.xlu0 %799
      %801 = vrot.lane.b32.xlu0 %v778, 16
      %v802 = vpop.permute.xlu0 %801
      %v803 = vsel %vm556, %v800, %v802
      %v807 = vmul.f32 %v773, %v800
      %v808 = vmul.f32 %v774, %v803
      %v809 = vmul.f32 %v783, %v802
      %810 = vrot.lane.b32.xlu0 %v786, 18
      %v811 = vpop.permute.xlu0 %810
      %812 = vrot.lane.b32.xlu0 %v787, 18
      %v813 = vpop.permute.xlu0 %812
      %v814 = vsel %vm568, %v811, %v813
      %v818 = vmul.f32 %v773, %v811
      %v819 = vmul.f32 %v774, %v814
      %v820 = vmul.f32 %v783, %v813
      %821 = vrot.lane.b32.xlu0 %v777, 32
      %v822 = vpop.permute.xlu0 %821
      %823 = vrot.lane.b32.xlu0 %v778, 32
      %v824 = vpop.permute.xlu0 %823
      %v825 = vsel %vm580, %v822, %v824
      %v829 = vmul.f32 %v773, %v822
      %v830 = vmul.f32 %v774, %v825
      %v831 = vmul.f32 %v783, %v824
      %832 = vrot.lane.b32.xlu0 %v786, 34
      %v833 = vpop.permute.xlu0 %832
      %834 = vrot.lane.b32.xlu0 %v787, 34
      %v835 = vpop.permute.xlu0 %834
      %v836 = vsel %vm504, %v833, %v835
      %v840 = vmul.f32 %v773, %v833
      %v841 = vmul.f32 %v774, %v836
      %v842 = vmul.f32 %v783, %v835
      %846 = vrot.lane.b32.xlu0 %v773, 127
      %v847 = vpop.permute.xlu0 %846
      %848 = vrot.lane.b32.xlu0 %v774, 127
      %v849 = vpop.permute.xlu0 %848
      %850 = vrot.lane.b32.xlu0 %v783, 127
      %v851 = vpop.permute.xlu0 %850
      %v852 = vsel %vm608, %v847, %v849
      %v853 = vsel %vm608, %v849, %v851
      %859 = vrot.lane.b32.xlu0 %v796, 126
      %v860 = vpop.permute.xlu0 %859
      %861 = vrot.lane.b32.xlu0 %v797, 126
      %v862 = vpop.permute.xlu0 %861
      %863 = vrot.lane.b32.xlu0 %v798, 126
      %v864 = vpop.permute.xlu0 %863
      %v865 = vsel %vm622, %v860, %v862
      %v866 = vsel %vm622, %v862, %v864
      %872 = vrot.lane.b32.xlu0 %v807, 112
      %v873 = vpop.permute.xlu0 %872
      %874 = vrot.lane.b32.xlu0 %v808, 112
      %v875 = vpop.permute.xlu0 %874
      %876 = vrot.lane.b32.xlu0 %v809, 112
      %v877 = vpop.permute.xlu0 %876
      %v878 = vsel %vm636, %v873, %v875
      %v879 = vsel %vm636, %v875, %v877
      %882 = vrot.lane.b32.xlu0 %v773, 111
      %v883 = vpop.permute.xlu0 %882
      %884 = vrot.lane.b32.xlu0 %v774, 111
      %v885 = vpop.permute.xlu0 %884
      %886 = vrot.lane.b32.xlu0 %v783, 111
      %v887 = vpop.permute.xlu0 %886
      %v888 = vsel %vm647, %v883, %v885
      %v889 = vsel %vm647, %v885, %v887
      %895 = vrot.lane.b32.xlu0 %v818, 110
      %v896 = vpop.permute.xlu0 %895
      %897 = vrot.lane.b32.xlu0 %v819, 110
      %v898 = vpop.permute.xlu0 %897
      %899 = vrot.lane.b32.xlu0 %v820, 110
      %v900 = vpop.permute.xlu0 %899
      %v901 = vsel %vm661, %v896, %v898
      %v902 = vsel %vm661, %v898, %v900
      %908 = vrot.lane.b32.xlu0 %v829, 96
      %v909 = vpop.permute.xlu0 %908
      %910 = vrot.lane.b32.xlu0 %v830, 96
      %v911 = vpop.permute.xlu0 %910
      %912 = vrot.lane.b32.xlu0 %v831, 96
      %v913 = vpop.permute.xlu0 %912
      %v914 = vsel %vm675, %v909, %v911
      %v915 = vsel %vm675, %v911, %v913
      %918 = vrot.lane.b32.xlu0 %v773, 95
      %v919 = vpop.permute.xlu0 %918
      %920 = vrot.lane.b32.xlu0 %v774, 95
      %v921 = vpop.permute.xlu0 %920
      %922 = vrot.lane.b32.xlu0 %v783, 95
      %v923 = vpop.permute.xlu0 %922
      %v924 = vsel %vm686, %v919, %v921
      %v925 = vsel %vm686, %v921, %v923
      %931 = vrot.lane.b32.xlu0 %v840, 94
      %v932 = vpop.permute.xlu0 %931
      %933 = vrot.lane.b32.xlu0 %v841, 94
      %v934 = vpop.permute.xlu0 %933
      %935 = vrot.lane.b32.xlu0 %v842, 94
      %v936 = vpop.permute.xlu0 %935
      %v937 = vsel %vm700, %v932, %v934
      %v938 = vsel %vm700, %v934, %v936
      %v941 = vpack.c.bf16 %v852, %v781
      %v942 = vpack.c.bf16 %v853, %v782
      %v943 = vpack.c.bf16 %v878, %v865
      %v944 = vpack.c.bf16 %v879, %v866
      %v945 = vpack.c.bf16 %v901, %v888
      %v946 = vpack.c.bf16 %v902, %v889
      %v947 = vpack.c.bf16 %v924, %v914
      %v948 = vpack.c.bf16 %v925, %v915
      %v949 = vpack.c.bf16 %v937, %v937
      %v950 = vpack.c.bf16 %v938, %v938
      %v951 = vld [vmem:[%s5] sm:$0xf]
      %v953 = vsel %vm721, %v951, 0
      %v956 = vsel %vm725, %v949, 0
      %v959 = vsel %vm725, %v950, 0
      %961 = vmatpush.bf16.msra.mxu0 0
      %962 = vmatpush.bf16.msra.mxu0 0
      %963 = vmatpush.bf16.msra.mxu0 0
      %964 = vmatpush.bf16.msra.mxu0 %v956
      %965 = vmatpush.bf16.msra.mxu0 %v947
      %966 = vmatpush.bf16.msra.mxu0 %v945
      %967 = vmatpush.bf16.msra.mxu0 %v943
      %968 = vmatpush.bf16.msra.mxu0 %v941
      %969 = vmatmul.bf16.gmra.mxu0 %v953
      %v970 = vpop.f32.mrf.mxu0
      %v971 = vadd.f32 0.0, %v970
      %v972 = vpop.f32.mrf.mxu0
      %973 = vdwg.mxu0
      %974 = vmatpush.bf16.msra.mxu0 0
      %975 = vmatpush.bf16.msra.mxu0 0
      %976 = vmatpush.bf16.msra.mxu0 0
      %977 = vmatpush.bf16.msra.mxu0 %v959
      %978 = vmatpush.bf16.msra.mxu0 %v948
      %979 = vmatpush.bf16.msra.mxu0 %v946
      %980 = vmatpush.bf16.msra.mxu0 %v944
      %981 = vmatpush.bf16.msra.mxu0 %v942
      %982 = vmatmul.bf16.gmra.mxu0 %v953
      %v983 = vpop.f32.mrf.mxu0
      %v984 = vadd.f32 0.0, %v983
      %v985 = vpop.f32.mrf.mxu0
      %986 = vdwg.mxu0
      %v987 = vmax.f32 %v971, 0.0
      %v988 = vmax.f32 %v984, 0.0
      %989 = vst.msk [vmem:[#allocation3] sm:$0xff] %vm556, %v987
      %991 = vrot.lane.b32.xlu0 %v987, 112
      %v992 = vpop.permute.xlu0 %991
      %994 = vst.msk [vmem:[#allocation3 + $0x8] sm:$0xff] %vm556, %v992
      %995 = vrot.lane.b32.xlu0 %v987, 96
      %v996 = vpop.permute.xlu0 %995
      %998 = vst.msk [vmem:[#allocation3 + $0x10] sm:$0xff] %vm556, %v996
      %999 = vrot.lane.b32.xlu0 %v987, 80
      %v1000 = vpop.permute.xlu0 %999
      %1002 = vst.msk [vmem:[#allocation3 + $0x18] sm:$0xff] %vm556, %v1000
      %1003 = vrot.lane.b32.xlu0 %v987, 64
      %v1004 = vpop.permute.xlu0 %1003
      %1006 = vst.msk [vmem:[#allocation3 + $0x20] sm:$0xff] %vm556, %v1004
      %1007 = vrot.lane.b32.xlu0 %v987, 48
      %v1008 = vpop.permute.xlu0 %1007
      %1010 = vst.msk [vmem:[#allocation3 + $0x28] sm:$0xff] %vm556, %v1008
      %1011 = vrot.lane.b32.xlu0 %v987, 32
      %v1012 = vpop.permute.xlu0 %1011
      %1014 = vst.msk [vmem:[#allocation3 + $0x30] sm:$0xff] %vm556, %v1012
      %1015 = vrot.lane.b32.xlu0 %v987, 16
      %v1016 = vpop.permute.xlu0 %1015
      %1018 = vst.msk [vmem:[#allocation3 + $0x38] sm:$0xff] %vm556, %v1016
      %1019 = vst.msk [vmem:[#allocation3 + $0x40] sm:$0xff] %vm556, %v988
      %1021 = vrot.lane.b32.xlu0 %v988, 112
      %v1022 = vpop.permute.xlu0 %1021
      %1024 = vst.msk [vmem:[#allocation3 + $0x48] sm:$0xff] %vm556, %v1022
      %1025 = vrot.lane.b32.xlu0 %v988, 96
      %v1026 = vpop.permute.xlu0 %1025
      %1028 = vst.msk [vmem:[#allocation3 + $0x50] sm:$0xff] %vm556, %v1026
      %1029 = vrot.lane.b32.xlu0 %v988, 80
      %v1030 = vpop.permute.xlu0 %1029
      %1032 = vst.msk [vmem:[#allocation3 + $0x58] sm:$0xff] %vm556, %v1030
      %1033 = vrot.lane.b32.xlu0 %v988, 64
      %v1034 = vpop.permute.xlu0 %1033
      %1036 = vst.msk [vmem:[#allocation3 + $0x60] sm:$0xff] %vm556, %v1034
      %1037 = vrot.lane.b32.xlu0 %v988, 48
      %v1038 = vpop.permute.xlu0 %1037
      %1040 = vst.msk [vmem:[#allocation3 + $0x68] sm:$0xff] %vm556, %v1038
      %1041 = vrot.lane.b32.xlu0 %v988, 32
      %v1042 = vpop.permute.xlu0 %1041
      %1044 = vst.msk [vmem:[#allocation3 + $0x70] sm:$0xff] %vm556, %v1042
      %1045 = vrot.lane.b32.xlu0 %v988, 16
      %v1046 = vpop.permute.xlu0 %1045
      %1048 = vst.msk [vmem:[#allocation3 + $0x78] sm:$0xff] %vm556, %v1046
      %v1049 = vld [vmem:[%s6] sm:$0xf]
      %v1050 = vld [vmem:[%s6 + $0x4] sm:$0xf]
      %v1051 = vld [vmem:[%s6 + $0x8] sm:$0xf]
      %v1052 = vld [vmem:[%s6 + $0xc] sm:$0xf]
      %v1053 = vld [vmem:[#allocation3] sm:$0xff]
      %v1054 = vld [vmem:[#allocation3 + $0x8] sm:$0xff]
      %v1055 = vld [vmem:[#allocation3 + $0x10] sm:$0xff]
      %v1056 = vld [vmem:[#allocation3 + $0x18] sm:$0xff]
      %v1057 = vld [vmem:[#allocation3 + $0x20] sm:$0xff]
      %v1058 = vld [vmem:[#allocation3 + $0x28] sm:$0xff]
      %v1059 = vld [vmem:[#allocation3 + $0x30] sm:$0xff]
      %v1060 = vld [vmem:[#allocation3 + $0x38] sm:$0xff]
      %v1061 = vld [vmem:[#allocation3 + $0x40] sm:$0xff]
      %v1062 = vld [vmem:[#allocation3 + $0x48] sm:$0xff]
      %v1063 = vld [vmem:[#allocation3 + $0x50] sm:$0xff]
      %v1064 = vld [vmem:[#allocation3 + $0x58] sm:$0xff]
      %v1065 = vld [vmem:[#allocation3 + $0x60] sm:$0xff]
      %v1066 = vld [vmem:[#allocation3 + $0x68] sm:$0xff]
      %v1067 = vld [vmem:[#allocation3 + $0x70] sm:$0xff]
      %v1068 = vld [vmem:[#allocation3 + $0x78] sm:$0xff]
      %v1069 = vpack.c.bf16 %v1054, %v1053
      %v1070 = vpack.c.bf16 %v1056, %v1055
      %v1071 = vpack.c.bf16 %v1058, %v1057
      %v1072 = vpack.c.bf16 %v1060, %v1059
      %v1073 = vpack.c.bf16 %v1062, %v1061
      %v1074 = vpack.c.bf16 %v1064, %v1063
      %v1075 = vpack.c.bf16 %v1066, %v1065
      %v1076 = vpack.c.bf16 %v1068, %v1067
      %v1077 = vld [vmem:[%s7] sm:$0xff]
      %v1078 = vld [vmem:[%s7 + $0x8] sm:$0xff]
      %v1079 = vld [vmem:[%s7 + $0x10] sm:$0xff]
      %v1080 = vld [vmem:[%s7 + $0x18] sm:$0xff]
      %1082 = vset.pattern.permute.xlu0 0
      %1083 = vperm.xlu0 %1082, %v1077
      %v1084 = vpop.permute.xlu0 %1083
      %1087 = vset.pattern.permute.xlu0 0
      %1088 = vperm.xlu0 %1087, %v1078
      %v1089 = vpop.permute.xlu0 %1088
      %1092 = vset.pattern.permute.xlu0 0
      %1093 = vperm.xlu0 %1092, %v1079
      %v1094 = vpop.permute.xlu0 %1093
      %1097 = vset.pattern.permute.xlu0 0
      %1098 = vperm.xlu0 %1097, %v1080
      %v1099 = vpop.permute.xlu0 %1098
      %v1105 = vunpack.c.l.b16 %v1049
      %v1106 = vunpack.c.l.b16 %v1050
      %v1107 = vunpack.c.l.b16 %v1051
      %v1108 = vunpack.c.l.b16 %v1052
      %v1109 = vpack.c.b16 %v1106, %v1105
      %v1110 = vpack.c.b16 %v1108, %v1107
      %1113 = vmatpush.bf16.msra.mxu0 %v1076
      %1114 = vmatpush.bf16.msra.mxu0 %v1075
      %1115 = vmatpush.bf16.msra.mxu0 %v1074
      %1116 = vmatpush.bf16.msra.mxu0 %v1073
      %1117 = vmatpush.bf16.msra.mxu0 %v1072
      %1118 = vmatpush.bf16.msra.mxu0 %v1071
      %1119 = vmatpush.bf16.msra.mxu0 %v1070
      %1120 = vmatpush.bf16.msra.mxu0 %v1069
      %1121 = vmatmul.bf16.gmra.mxu0 %v1109
      %v1122 = vpop.f32.mrf.mxu0
      %v1123 = vadd.f32 %v1084, %v1122
      %v1124 = vpop.f32.mrf.mxu0
      %v1125 = vadd.f32 %v1089, %v1124
      %1126 = vmatmul.bf16.gmra.mxu0 %v1110
      %v1127 = vpop.f32.mrf.mxu0
      %v1128 = vadd.f32 %v1094, %v1127
      %v1129 = vpop.f32.mrf.mxu0
      %v1130 = vadd.f32 %v1099, %v1129
      %1131 = vdwg.mxu0
      %1132 = vst.msk [vmem:[%s500] sm:$0xff] %vm556, %v1123
      %1133 = vst.msk [vmem:[%s500 + $0x8] sm:$0xff] %vm556, %v1125
      %1134 = vst.msk [vmem:[%s500 + $0x10] sm:$0xff] %vm556, %v1128
      %1135 = vst.msk [vmem:[%s500 + $0x18] sm:$0xff] %vm556, %v1130
      %v1136 = vmul.f32 %v1128, 1.442695
      %v1137 = vpow.pop %v1136
      %v1138 = vmul.f32 %v1130, 1.442695
      %v1139 = vpow.pop %v1138
      %v1140 = vld [vmem:[%s490] sm:$0xff]
      %v1141 = vld [vmem:[%s490 + $0x8] sm:$0xff]
      %v1142 = vmul.f32 %v1137, %v1140
      %v1143 = vmul.f32 %v1139, %v1141
      %v1144 = vadd.f32 %v1123, %v1142
      %v1145 = vadd.f32 %v1125, %v1143
      %v1146 = vld [vmem:[%s8] sm:$0xf]
      %v1147 = vld [vmem:[%s8 + $0x4] sm:$0xf]
      %v1148 = vld [vmem:[%s8 + $0x8] sm:$0xf]
      %v1149 = vld [vmem:[%s8 + $0xc] sm:$0xf]
      %v1150 = vld [vmem:[%s8 + $0x10] sm:$0xf]
      %v1151 = vld [vmem:[%s8 + $0x14] sm:$0xf]
      %v1152 = vld [vmem:[%s8 + $0x18] sm:$0xf]
      %v1153 = vld [vmem:[%s8 + $0x1c] sm:$0xf]
      %v1154 = vld [vmem:[%s8 + $0x20] sm:$0xf]
      %v1155 = vld [vmem:[%s8 + $0x24] sm:$0xf]
      %v1156 = vld [vmem:[%s8 + $0x28] sm:$0xf]
      %v1157 = vld [vmem:[%s8 + $0x2c] sm:$0xf]
      %v1158 = vld [vmem:[%s8 + $0x30] sm:$0xf]
      %v1159 = vld [vmem:[%s8 + $0x34] sm:$0xf]
      %v1160 = vld [vmem:[%s8 + $0x38] sm:$0xf]
      %v1161 = vld [vmem:[%s8 + $0x3c] sm:$0xf]
      %v1162 = vpack.c.bf16 %v1145, %v1144
      %v1163 = vld [vmem:[%s9] sm:$0xff]
      %v1164 = vld [vmem:[%s9 + $0x8] sm:$0xff]
      %v1165 = vld [vmem:[%s9 + $0x10] sm:$0xff]
      %v1166 = vld [vmem:[%s9 + $0x18] sm:$0xff]
      %v1167 = vld [vmem:[%s9 + $0x20] sm:$0xff]
      %v1168 = vld [vmem:[%s9 + $0x28] sm:$0xff]
      %v1169 = vld [vmem:[%s9 + $0x30] sm:$0xff]
      %v1170 = vld [vmem:[%s9 + $0x38] sm:$0xff]
      %v1171 = vld [vmem:[%s9 + $0x40] sm:$0xff]
      %v1172 = vld [vmem:[%s9 + $0x48] sm:$0xff]
      %v1173 = vld [vmem:[%s9 + $0x50] sm:$0xff]
      %v1174 = vld [vmem:[%s9 + $0x58] sm:$0xff]
      %v1175 = vld [vmem:[%s9 + $0x60] sm:$0xff]
      %v1176 = vld [vmem:[%s9 + $0x68] sm:$0xff]
      %v1177 = vld [vmem:[%s9 + $0x70] sm:$0xff]
      %v1178 = vld [vmem:[%s9 + $0x78] sm:$0xff]
      %1180 = vset.pattern.permute.xlu0 0
      %1181 = vperm.xlu0 %1180, %v1163
      %v1182 = vpop.permute.xlu0 %1181
      %1185 = vset.pattern.permute.xlu0 0
      %1186 = vperm.xlu0 %1185, %v1164
      %v1187 = vpop.permute.xlu0 %1186
      %1190 = vset.pattern.permute.xlu0 0
      %1191 = vperm.xlu0 %1190, %v1165
      %v1192 = vpop.permute.xlu0 %1191
      %1195 = vset.pattern.permute.xlu0 0
      %1196 = vperm.xlu0 %1195, %v1166
      %v1197 = vpop.permute.xlu0 %1196
      %1200 = vset.pattern.permute.xlu0 0
      %1201 = vperm.xlu0 %1200, %v1167
      %v1202 = vpop.permute.xlu0 %1201
      %1205 = vset.pattern.permute.xlu0 0
      %1206 = vperm.xlu0 %1205, %v1168
      %v1207 = vpop.permute.xlu0 %1206
      %1210 = vset.pattern.permute.xlu0 0
      %1211 = vperm.xlu0 %1210, %v1169
      %v1212 = vpop.permute.xlu0 %1211
      %1215 = vset.pattern.permute.xlu0 0
      %1216 = vperm.xlu0 %1215, %v1170
      %v1217 = vpop.permute.xlu0 %1216
      %1220 = vset.pattern.permute.xlu0 0
      %1221 = vperm.xlu0 %1220, %v1171
      %v1222 = vpop.permute.xlu0 %1221
      %1225 = vset.pattern.permute.xlu0 0
      %1226 = vperm.xlu0 %1225, %v1172
      %v1227 = vpop.permute.xlu0 %1226
      %1230 = vset.pattern.permute.xlu0 0
      %1231 = vperm.xlu0 %1230, %v1173
      %v1232 = vpop.permute.xlu0 %1231
      %1235 = vset.pattern.permute.xlu0 0
      %1236 = vperm.xlu0 %1235, %v1174
      %v1237 = vpop.permute.xlu0 %1236
      %1240 = vset.pattern.permute.xlu0 0
      %1241 = vperm.xlu0 %1240, %v1175
      %v1242 = vpop.permute.xlu0 %1241
      %1245 = vset.pattern.permute.xlu0 0
      %1246 = vperm.xlu0 %1245, %v1176
      %v1247 = vpop.permute.xlu0 %1246
      %1250 = vset.pattern.permute.xlu0 0
      %1251 = vperm.xlu0 %1250, %v1177
      %v1252 = vpop.permute.xlu0 %1251
      %1255 = vset.pattern.permute.xlu0 0
      %1256 = vperm.xlu0 %1255, %v1178
      %v1257 = vpop.permute.xlu0 %1256
      %v1275 = vunpack.c.l.b16 %v1146
      %v1276 = vunpack.c.l.b16 %v1147
      %v1277 = vunpack.c.l.b16 %v1148
      %v1278 = vunpack.c.l.b16 %v1149
      %v1279 = vunpack.c.l.b16 %v1150
      %v1280 = vunpack.c.l.b16 %v1151
      %v1281 = vunpack.c.l.b16 %v1152
      %v1282 = vunpack.c.l.b16 %v1153
      %v1283 = vunpack.c.l.b16 %v1154
      %v1284 = vunpack.c.l.b16 %v1155
      %v1285 = vunpack.c.l.b16 %v1156
      %v1286 = vunpack.c.l.b16 %v1157
      %v1287 = vunpack.c.l.b16 %v1158
      %v1288 = vunpack.c.l.b16 %v1159
      %v1289 = vunpack.c.l.b16 %v1160
      %v1290 = vunpack.c.l.b16 %v1161
      %v1291 = vpack.c.b16 %v1276, %v1275
      %v1292 = vpack.c.b16 %v1278, %v1277
      %v1293 = vpack.c.b16 %v1280, %v1279
      %v1294 = vpack.c.b16 %v1282, %v1281
      %v1295 = vpack.c.b16 %v1284, %v1283
      %v1296 = vpack.c.b16 %v1286, %v1285
      %v1297 = vpack.c.b16 %v1288, %v1287
      %v1298 = vpack.c.b16 %v1290, %v1289
      %v1300 = vsel %vm556, %v1291, 0
      %v1303 = vsel %vm556, %v1292, 0
      %v1306 = vsel %vm556, %v1293, 0
      %v1309 = vsel %vm556, %v1294, 0
      %v1312 = vsel %vm556, %v1295, 0
      %v1315 = vsel %vm556, %v1296, 0
      %v1318 = vsel %vm556, %v1297, 0
      %v1321 = vsel %vm556, %v1298, 0
      %1323 = vmatpush.bf16.msra.mxu0 0
      %1324 = vmatpush.bf16.msra.mxu0 0
      %1325 = vmatpush.bf16.msra.mxu0 0
      %1326 = vmatpush.bf16.msra.mxu0 0
      %1327 = vmatpush.bf16.msra.mxu0 0
      %1328 = vmatpush.bf16.msra.mxu0 0
      %1329 = vmatpush.bf16.msra.mxu0 0
      %1330 = vmatpush.bf16.msra.mxu0 %v1162
      %1331 = vmatmul.bf16.gmra.mxu0 %v1300
      %v1332 = vpop.f32.mrf.mxu0
      %v1333 = vadd.f32 %v1182, %v1332
      %v1334 = vpop.f32.mrf.mxu0
      %v1335 = vadd.f32 %v1187, %v1334
      %1336 = vmatmul.bf16.gmra.mxu0 %v1303
      %v1337 = vpop.f32.mrf.mxu0
      %v1338 = vadd.f32 %v1192, %v1337
      %v1339 = vpop.f32.mrf.mxu0
      %v1340 = vadd.f32 %v1197, %v1339
      %1341 = vmatmul.bf16.gmra.mxu0 %v1306
      %v1342 = vpop.f32.mrf.mxu0
      %v1343 = vadd.f32 %v1202, %v1342
      %v1344 = vpop.f32.mrf.mxu0
      %v1345 = vadd.f32 %v1207, %v1344
      %1346 = vmatmul.bf16.gmra.mxu0 %v1309
      %v1347 = vpop.f32.mrf.mxu0
      %v1348 = vadd.f32 %v1212, %v1347
      %v1349 = vpop.f32.mrf.mxu0
      %v1350 = vadd.f32 %v1217, %v1349
      %1351 = vmatmul.bf16.gmra.mxu0 %v1312
      %v1352 = vpop.f32.mrf.mxu0
      %v1353 = vadd.f32 %v1222, %v1352
      %v1354 = vpop.f32.mrf.mxu0
      %v1355 = vadd.f32 %v1227, %v1354
      %1356 = vmatmul.bf16.gmra.mxu0 %v1315
      %v1357 = vpop.f32.mrf.mxu0
      %v1358 = vadd.f32 %v1232, %v1357
      %v1359 = vpop.f32.mrf.mxu0
      %v1360 = vadd.f32 %v1237, %v1359
      %1361 = vmatmul.bf16.gmra.mxu0 %v1318
      %v1362 = vpop.f32.mrf.mxu0
      %v1363 = vadd.f32 %v1242, %v1362
      %v1364 = vpop.f32.mrf.mxu0
      %v1365 = vadd.f32 %v1247, %v1364
      %1366 = vmatmul.bf16.gmra.mxu0 %v1321
      %v1367 = vpop.f32.mrf.mxu0
      %v1368 = vadd.f32 %v1252, %v1367
      %v1369 = vpop.f32.mrf.mxu0
      %v1370 = vadd.f32 %v1257, %v1369
      %1371 = vdwg.mxu0
      %1372 = vst.msk [vmem:[#allocation4] sm:$0xff] %vm556, %v1333
      %1374 = vrot.lane.b32.xlu0 %v1335, 16
      %v1375 = vpop.permute.xlu0 %1374
      %vm1377 = vcmask 261248
      %1378 = vst.msk [vmem:[#allocation4] sm:$0xff] %vm1377, %v1375
      %1380 = vrot.lane.b32.xlu0 %v1338, 32
      %v1381 = vpop.permute.xlu0 %1380
      %vm1383 = vcmask 392448
      %1384 = vst.msk [vmem:[#allocation4] sm:$0xff] %vm1383, %v1381
      %1386 = vrot.lane.b32.xlu0 %v1340, 48
      %v1387 = vpop.permute.xlu0 %1386
      %vm1389 = vcmask 523648
      %1390 = vst.msk [vmem:[#allocation4] sm:$0xff] %vm1389, %v1387
      %1392 = vrot.lane.b32.xlu0 %v1343, 64
      %v1393 = vpop.permute.xlu0 %1392
      %vm1395 = vcmask 654848
      %1396 = vst.msk [vmem:[#allocation4] sm:$0xff] %vm1395, %v1393
      %1398 = vrot.lane.b32.xlu0 %v1345, 80
      %v1399 = vpop.permute.xlu0 %1398
      %vm1401 = vcmask 786048
      %1402 = vst.msk [vmem:[#allocation4] sm:$0xff] %vm1401, %v1399
      %1404 = vrot.lane.b32.xlu0 %v1348, 96
      %v1405 = vpop.permute.xlu0 %1404
      %vm1407 = vcmask 917248
      %1408 = vst.msk [vmem:[#allocation4] sm:$0xff] %vm1407, %v1405
      %1410 = vrot.lane.b32.xlu0 %v1350, 112
      %v1411 = vpop.permute.xlu0 %1410
      %vm1413 = vcmask 1048448
      %1414 = vst.msk [vmem:[#allocation4] sm:$0xff] %vm1413, %v1411
      %1415 = vst.msk [vmem:[#allocation4 + $0x8] sm:$0xff] %vm556, %v1353
      %1417 = vrot.lane.b32.xlu0 %v1355, 16
      %v1418 = vpop.permute.xlu0 %1417
      %1420 = vst.msk [vmem:[#allocation4 + $0x8] sm:$0xff] %vm1377, %v1418
      %1422 = vrot.lane.b32.xlu0 %v1358, 32
      %v1423 = vpop.permute.xlu0 %1422
      %1425 = vst.msk [vmem:[#allocation4 + $0x8] sm:$0xff] %vm1383, %v1423
      %1427 = vrot.lane.b32.xlu0 %v1360, 48
      %v1428 = vpop.permute.xlu0 %1427
      %1430 = vst.msk [vmem:[#allocation4 + $0x8] sm:$0xff] %vm1389, %v1428
      %1432 = vrot.lane.b32.xlu0 %v1363, 64
      %v1433 = vpop.permute.xlu0 %1432
      %1435 = vst.msk [vmem:[#allocation4 + $0x8] sm:$0xff] %vm1395, %v1433
      %1437 = vrot.lane.b32.xlu0 %v1365, 80
      %v1438 = vpop.permute.xlu0 %1437
      %1440 = vst.msk [vmem:[#allocation4 + $0x8] sm:$0xff] %vm1401, %v1438
      %1442 = vrot.lane.b32.xlu0 %v1368, 96
      %v1443 = vpop.permute.xlu0 %1442
      %1445 = vst.msk [vmem:[#allocation4 + $0x8] sm:$0xff] %vm1407, %v1443
      %1447 = vrot.lane.b32.xlu0 %v1370, 112
      %v1448 = vpop.permute.xlu0 %1447
      %1450 = vst.msk [vmem:[#allocation4 + $0x8] sm:$0xff] %vm1413, %v1448
      %v1451 = vld [vmem:[#allocation4] sm:$0xff]
      %v1452 = vld [vmem:[#allocation4 + $0x8] sm:$0xff]
      %1455 = vrot.lane.b32.xlu0 %v1451, 17
      %v1456 = vpop.permute.xlu0 %1455
      %1457 = vrot.lane.b32.xlu0 %v1452, 17
      %v1458 = vpop.permute.xlu0 %1457
      %v1459 = vsel %vm515, %v1456, %v1458
      %1463 = vst.msk [vmem:[#allocation2] sm:$0xff] %vm520, %v1456
      %1464 = vst [vmem:[#allocation2 + $0x8] sm:$0xff] %v1459
      %1465 = vst.msk [vmem:[#allocation2 + $0x10] sm:$0xff] %vm515, %v1458
      %v1466 = vld [vmem:[#allocation2] sm:$0xff]
      %v1467 = vld [vmem:[#allocation2 + $0x8] sm:$0xff]
      %v1468 = vld [vmem:[%s2] sm:$0x3]
      %v1470 = vperm.slane %v1468, 0
      %v1471 = vperm.slane %v1468, 1
      %v1474 = vmul.f32 %v1466, %v1470
      %v1475 = vmul.f32 %v1467, %v1471
      %v1476 = vld [vmem:[#allocation2 + $0x10] sm:$0xff]
      %v1477 = vld [vmem:[%s535] sm:$0x3]
      %v1479 = vperm.slane %v1477, 0
      %v1480 = vperm.slane %v1477, 1
      %1481 = vrot.lane.b32.xlu0 %v1479, 2
      %v1482 = vpop.permute.xlu0 %1481
      %1483 = vrot.lane.b32.xlu0 %v1480, 2
      %v1484 = vpop.permute.xlu0 %1483
      %v1485 = vsel %vm544, %v1482, %v1484
      %v1489 = vmul.f32 %v1466, %v1482
      %v1490 = vmul.f32 %v1467, %v1485
      %v1491 = vmul.f32 %v1476, %v1484
      %1492 = vrot.lane.b32.xlu0 %v1470, 16
      %v1493 = vpop.permute.xlu0 %1492
      %1494 = vrot.lane.b32.xlu0 %v1471, 16
      %v1495 = vpop.permute.xlu0 %1494
      %v1496 = vsel %vm556, %v1493, %v1495
      %v1500 = vmul.f32 %v1466, %v1493
      %v1501 = vmul.f32 %v1467, %v1496
      %v1502 = vmul.f32 %v1476, %v1495
      %1503 = vrot.lane.b32.xlu0 %v1479, 18
      %v1504 = vpop.permute.xlu0 %1503
      %1505 = vrot.lane.b32.xlu0 %v1480, 18
      %v1506 = vpop.permute.xlu0 %1505
      %v1507 = vsel %vm568, %v1504, %v1506
      %v1511 = vmul.f32 %v1466, %v1504
      %v1512 = vmul.f32 %v1467, %v1507
      %v1513 = vmul.f32 %v1476, %v1506
      %1514 = vrot.lane.b32.xlu0 %v1470, 32
      %v1515 = vpop.permute.xlu0 %1514
      %1516 = vrot.lane.b32.xlu0 %v1471, 32
      %v1517 = vpop.permute.xlu0 %1516
      %v1518 = vsel %vm580, %v1515, %v1517
      %v1522 = vmul.f32 %v1466, %v1515
      %v1523 = vmul.f32 %v1467, %v1518
      %v1524 = vmul.f32 %v1476, %v1517
      %1525 = vrot.lane.b32.xlu0 %v1479, 34
      %v1526 = vpop.permute.xlu0 %1525
      %1527 = vrot.lane.b32.xlu0 %v1480, 34
      %v1528 = vpop.permute.xlu0 %1527
      %v1529 = vsel %vm504, %v1526, %v1528
      %v1533 = vmul.f32 %v1466, %v1526
      %v1534 = vmul.f32 %v1467, %v1529
      %v1535 = vmul.f32 %v1476, %v1528
      %1539 = vrot.lane.b32.xlu0 %v1466, 127
      %v1540 = vpop.permute.xlu0 %1539
      %1541 = vrot.lane.b32.xlu0 %v1467, 127
      %v1542 = vpop.permute.xlu0 %1541
      %1543 = vrot.lane.b32.xlu0 %v1476, 127
      %v1544 = vpop.permute.xlu0 %1543
      %v1545 = vsel %vm608, %v1540, %v1542
      %v1546 = vsel %vm608, %v1542, %v1544
      %1552 = vrot.lane.b32.xlu0 %v1489, 126
      %v1553 = vpop.permute.xlu0 %1552
      %1554 = vrot.lane.b32.xlu0 %v1490, 126
      %v1555 = vpop.permute.xlu0 %1554
      %1556 = vrot.lane.b32.xlu0 %v1491, 126
      %v1557 = vpop.permute.xlu0 %1556
      %v1558 = vsel %vm622, %v1553, %v1555
      %v1559 = vsel %vm622, %v1555, %v1557
      %1565 = vrot.lane.b32.xlu0 %v1500, 112
      %v1566 = vpop.permute.xlu0 %1565
      %1567 = vrot.lane.b32.xlu0 %v1501, 112
      %v1568 = vpop.permute.xlu0 %1567
      %1569 = vrot.lane.b32.xlu0 %v1502, 112
      %v1570 = vpop.permute.xlu0 %1569
      %v1571 = vsel %vm636, %v1566, %v1568
      %v1572 = vsel %vm636, %v1568, %v1570
      %1575 = vrot.lane.b32.xlu0 %v1466, 111
      %v1576 = vpop.permute.xlu0 %1575
      %1577 = vrot.lane.b32.xlu0 %v1467, 111
      %v1578 = vpop.permute.xlu0 %1577
      %1579 = vrot.lane.b32.xlu0 %v1476, 111
      %v1580 = vpop.permute.xlu0 %1579
      %v1581 = vsel %vm647, %v1576, %v1578
      %v1582 = vsel %vm647, %v1578, %v1580
      %1588 = vrot.lane.b32.xlu0 %v1511, 110
      %v1589 = vpop.permute.xlu0 %1588
      %1590 = vrot.lane.b32.xlu0 %v1512, 110
      %v1591 = vpop.permute.xlu0 %1590
      %1592 = vrot.lane.b32.xlu0 %v1513, 110
      %v1593 = vpop.permute.xlu0 %1592
      %v1594 = vsel %vm661, %v1589, %v1591
      %v1595 = vsel %vm661, %v1591, %v1593
      %1601 = vrot.lane.b32.xlu0 %v1522, 96
      %v1602 = vpop.permute.xlu0 %1601
      %1603 = vrot.lane.b32.xlu0 %v1523, 96
      %v1604 = vpop.permute.xlu0 %1603
      %1605 = vrot.lane.b32.xlu0 %v1524, 96
      %v1606 = vpop.permute.xlu0 %1605
      %v1607 = vsel %vm675, %v1602, %v1604
      %v1608 = vsel %vm675, %v1604, %v1606
      %1611 = vrot.lane.b32.xlu0 %v1466, 95
      %v1612 = vpop.permute.xlu0 %1611
      %1613 = vrot.lane.b32.xlu0 %v1467, 95
      %v1614 = vpop.permute.xlu0 %1613
      %1615 = vrot.lane.b32.xlu0 %v1476, 95
      %v1616 = vpop.permute.xlu0 %1615
      %v1617 = vsel %vm686, %v1612, %v1614
      %v1618 = vsel %vm686, %v1614, %v1616
      %1624 = vrot.lane.b32.xlu0 %v1533, 94
      %v1625 = vpop.permute.xlu0 %1624
      %1626 = vrot.lane.b32.xlu0 %v1534, 94
      %v1627 = vpop.permute.xlu0 %1626
      %1628 = vrot.lane.b32.xlu0 %v1535, 94
      %v1629 = vpop.permute.xlu0 %1628
      %v1630 = vsel %vm700, %v1625, %v1627
      %v1631 = vsel %vm700, %v1627, %v1629
      %v1634 = vpack.c.bf16 %v1545, %v1474
      %v1635 = vpack.c.bf16 %v1546, %v1475
      %v1636 = vpack.c.bf16 %v1571, %v1558
      %v1637 = vpack.c.bf16 %v1572, %v1559
      %v1638 = vpack.c.bf16 %v1594, %v1581
      %v1639 = vpack.c.bf16 %v1595, %v1582
      %v1640 = vpack.c.bf16 %v1617, %v1607
      %v1641 = vpack.c.bf16 %v1618, %v1608
      %v1642 = vpack.c.bf16 %v1630, %v1630
      %v1643 = vpack.c.bf16 %v1631, %v1631
      %v1644 = vld [vmem:[%s10] sm:$0xf]
      %v1646 = vsel %vm721, %v1644, 0
      %v1649 = vsel %vm725, %v1642, 0
      %v1652 = vsel %vm725, %v1643, 0
      %1654 = vmatpush.bf16.msra.mxu0 0
      %1655 = vmatpush.bf16.msra.mxu0 0
      %1656 = vmatpush.bf16.msra.mxu0 0
      %1657 = vmatpush.bf16.msra.mxu0 %v1649
      %1658 = vmatpush.bf16.msra.mxu0 %v1640
      %1659 = vmatpush.bf16.msra.mxu0 %v1638
      %1660 = vmatpush.bf16.msra.mxu0 %v1636
      %1661 = vmatpush.bf16.msra.mxu0 %v1634
      %1662 = vmatmul.bf16.gmra.mxu0 %v1646
      %v1663 = vpop.f32.mrf.mxu0
      %v1664 = vadd.f32 0.0, %v1663
      %v1665 = vpop.f32.mrf.mxu0
      %1666 = vdwg.mxu0
      %1667 = vmatpush.bf16.msra.mxu0 0
      %1668 = vmatpush.bf16.msra.mxu0 0
      %1669 = vmatpush.bf16.msra.mxu0 0
      %1670 = vmatpush.bf16.msra.mxu0 %v1652
      %1671 = vmatpush.bf16.msra.mxu0 %v1641
      %1672 = vmatpush.bf16.msra.mxu0 %v1639
      %1673 = vmatpush.bf16.msra.mxu0 %v1637
      %1674 = vmatpush.bf16.msra.mxu0 %v1635
      %1675 = vmatmul.bf16.gmra.mxu0 %v1646
      %v1676 = vpop.f32.mrf.mxu0
      %v1677 = vadd.f32 0.0, %v1676
      %v1678 = vpop.f32.mrf.mxu0
      %1679 = vdwg.mxu0
      %v1680 = vmax.f32 %v1664, 0.0
      %v1681 = vmax.f32 %v1677, 0.0
      %v1682 = vld [vmem:[%s12] sm:$0xff]
      %1685 = vrot.lane.b32.xlu0 %v1680, 17
      %v1686 = vpop.permute.xlu0 %1685
      %1687 = vrot.lane.b32.xlu0 %v1681, 17
      %v1688 = vpop.permute.xlu0 %1687
      %v1689 = vsel %vm515, %v1686, %v1688
      %1693 = vst.msk [vmem:[#allocation2] sm:$0xff] %vm520, %v1686
      %1694 = vst [vmem:[#allocation2 + $0x8] sm:$0xff] %v1689
      %1695 = vst.msk [vmem:[#allocation2 + $0x10] sm:$0xff] %vm515, %v1688
      %v1696 = vld [vmem:[#allocation2] sm:$0xff]
      %v1697 = vld [vmem:[#allocation2 + $0x8] sm:$0xff]
      %v1698 = vld [vmem:[%s2] sm:$0x3]
      %v1700 = vperm.slane %v1698, 0
      %v1701 = vperm.slane %v1698, 1
      %v1704 = vmul.f32 %v1696, %v1700
      %v1705 = vmul.f32 %v1697, %v1701
      %v1706 = vld [vmem:[#allocation2 + $0x10] sm:$0xff]
      %v1707 = vld [vmem:[%s535] sm:$0x3]
      %v1709 = vperm.slane %v1707, 0
      %v1710 = vperm.slane %v1707, 1
      %1711 = vrot.lane.b32.xlu0 %v1709, 2
      %v1712 = vpop.permute.xlu0 %1711
      %1713 = vrot.lane.b32.xlu0 %v1710, 2
      %v1714 = vpop.permute.xlu0 %1713
      %v1715 = vsel %vm544, %v1712, %v1714
      %v1719 = vmul.f32 %v1696, %v1712
      %v1720 = vmul.f32 %v1697, %v1715
      %v1721 = vmul.f32 %v1706, %v1714
      %1722 = vrot.lane.b32.xlu0 %v1700, 16
      %v1723 = vpop.permute.xlu0 %1722
      %1724 = vrot.lane.b32.xlu0 %v1701, 16
      %v1725 = vpop.permute.xlu0 %1724
      %v1726 = vsel %vm556, %v1723, %v1725
      %v1730 = vmul.f32 %v1696, %v1723
      %v1731 = vmul.f32 %v1697, %v1726
      %v1732 = vmul.f32 %v1706, %v1725
      %1733 = vrot.lane.b32.xlu0 %v1709, 18
      %v1734 = vpop.permute.xlu0 %1733
      %1735 = vrot.lane.b32.xlu0 %v1710, 18
      %v1736 = vpop.permute.xlu0 %1735
      %v1737 = vsel %vm568, %v1734, %v1736
      %v1741 = vmul.f32 %v1696, %v1734
      %v1742 = vmul.f32 %v1697, %v1737
      %v1743 = vmul.f32 %v1706, %v1736
      %1744 = vrot.lane.b32.xlu0 %v1700, 32
      %v1745 = vpop.permute.xlu0 %1744
      %1746 = vrot.lane.b32.xlu0 %v1701, 32
      %v1747 = vpop.permute.xlu0 %1746
      %v1748 = vsel %vm580, %v1745, %v1747
      %v1752 = vmul.f32 %v1696, %v1745
      %v1753 = vmul.f32 %v1697, %v1748
      %v1754 = vmul.f32 %v1706, %v1747
      %1755 = vrot.lane.b32.xlu0 %v1709, 34
      %v1756 = vpop.permute.xlu0 %1755
      %1757 = vrot.lane.b32.xlu0 %v1710, 34
      %v1758 = vpop.permute.xlu0 %1757
      %v1759 = vsel %vm504, %v1756, %v1758
      %v1763 = vmul.f32 %v1696, %v1756
      %v1764 = vmul.f32 %v1697, %v1759
      %v1765 = vmul.f32 %v1706, %v1758
      %1769 = vrot.lane.b32.xlu0 %v1696, 127
      %v1770 = vpop.permute.xlu0 %1769
      %1771 = vrot.lane.b32.xlu0 %v1697, 127
      %v1772 = vpop.permute.xlu0 %1771
      %1773 = vrot.lane.b32.xlu0 %v1706, 127
      %v1774 = vpop.permute.xlu0 %1773
      %v1775 = vsel %vm608, %v1770, %v1772
      %v1776 = vsel %vm608, %v1772, %v1774
      %1782 = vrot.lane.b32.xlu0 %v1719, 126
      %v1783 = vpop.permute.xlu0 %1782
      %1784 = vrot.lane.b32.xlu0 %v1720, 126
      %v1785 = vpop.permute.xlu0 %1784
      %1786 = vrot.lane.b32.xlu0 %v1721, 126
      %v1787 = vpop.permute.xlu0 %1786
      %v1788 = vsel %vm622, %v1783, %v1785
      %v1789 = vsel %vm622, %v1785, %v1787
      %1795 = vrot.lane.b32.xlu0 %v1730, 112
      %v1796 = vpop.permute.xlu0 %1795
      %1797 = vrot.lane.b32.xlu0 %v1731, 112
      %v1798 = vpop.permute.xlu0 %1797
      %1799 = vrot.lane.b32.xlu0 %v1732, 112
      %v1800 = vpop.permute.xlu0 %1799
      %v1801 = vsel %vm636, %v1796, %v1798
      %v1802 = vsel %vm636, %v1798, %v1800
      %1805 = vrot.lane.b32.xlu0 %v1696, 111
      %v1806 = vpop.permute.xlu0 %1805
      %1807 = vrot.lane.b32.xlu0 %v1697, 111
      %v1808 = vpop.permute.xlu0 %1807
      %1809 = vrot.lane.b32.xlu0 %v1706, 111
      %v1810 = vpop.permute.xlu0 %1809
      %v1811 = vsel %vm647, %v1806, %v1808
      %v1812 = vsel %vm647, %v1808, %v1810
      %1818 = vrot.lane.b32.xlu0 %v1741, 110
      %v1819 = vpop.permute.xlu0 %1818
      %1820 = vrot.lane.b32.xlu0 %v1742, 110
      %v1821 = vpop.permute.xlu0 %1820
      %1822 = vrot.lane.b32.xlu0 %v1743, 110
      %v1823 = vpop.permute.xlu0 %1822
      %v1824 = vsel %vm661, %v1819, %v1821
      %v1825 = vsel %vm661, %v1821, %v1823
      %1831 = vrot.lane.b32.xlu0 %v1752, 96
      %v1832 = vpop.permute.xlu0 %1831
      %1833 = vrot.lane.b32.xlu0 %v1753, 96
      %v1834 = vpop.permute.xlu0 %1833
      %1835 = vrot.lane.b32.xlu0 %v1754, 96
      %v1836 = vpop.permute.xlu0 %1835
      %v1837 = vsel %vm675, %v1832, %v1834
      %v1838 = vsel %vm675, %v1834, %v1836
      %1841 = vrot.lane.b32.xlu0 %v1696, 95
      %v1842 = vpop.permute.xlu0 %1841
      %1843 = vrot.lane.b32.xlu0 %v1697, 95
      %v1844 = vpop.permute.xlu0 %1843
      %1845 = vrot.lane.b32.xlu0 %v1706, 95
      %v1846 = vpop.permute.xlu0 %1845
      %v1847 = vsel %vm686, %v1842, %v1844
      %v1848 = vsel %vm686, %v1844, %v1846
      %1854 = vrot.lane.b32.xlu0 %v1763, 94
      %v1855 = vpop.permute.xlu0 %1854
      %1856 = vrot.lane.b32.xlu0 %v1764, 94
      %v1857 = vpop.permute.xlu0 %1856
      %1858 = vrot.lane.b32.xlu0 %v1765, 94
      %v1859 = vpop.permute.xlu0 %1858
      %v1860 = vsel %vm700, %v1855, %v1857
      %v1861 = vsel %vm700, %v1857, %v1859
      %v1864 = vpack.c.bf16 %v1775, %v1704
      %v1865 = vpack.c.bf16 %v1776, %v1705
      %v1866 = vpack.c.bf16 %v1801, %v1788
      %v1867 = vpack.c.bf16 %v1802, %v1789
      %v1868 = vpack.c.bf16 %v1824, %v1811
      %v1869 = vpack.c.bf16 %v1825, %v1812
      %v1870 = vpack.c.bf16 %v1847, %v1837
      %v1871 = vpack.c.bf16 %v1848, %v1838
      %v1872 = vpack.c.bf16 %v1860, %v1860
      %v1873 = vpack.c.bf16 %v1861, %v1861
      %v1874 = vld [vmem:[%s11] sm:$0xf]
      %1876 = vset.pattern.permute.xlu0 0
      %1877 = vperm.xlu0 %1876, %v1682
      %v1878 = vpop.permute.xlu0 %1877
      %v1881 = vsel %vm721, %v1874, 0
      %v1884 = vsel %vm725, %v1872, 0
      %v1887 = vsel %vm725, %v1873, 0
      %1889 = vmatpush.bf16.msra.mxu0 0
      %1890 = vmatpush.bf16.msra.mxu0 0
      %1891 = vmatpush.bf16.msra.mxu0 0
      %1892 = vmatpush.bf16.msra.mxu0 %v1884
      %1893 = vmatpush.bf16.msra.mxu0 %v1870
      %1894 = vmatpush.bf16.msra.mxu0 %v1868
      %1895 = vmatpush.bf16.msra.mxu0 %v1866
      %1896 = vmatpush.bf16.msra.mxu0 %v1864
      %1897 = vmatmul.bf16.gmra.mxu0 %v1881
      %v1898 = vpop.f32.mrf.mxu0
      %v1899 = vadd.f32 %v1878, %v1898
      %v1900 = vpop.f32.mrf.mxu0
      %1901 = vdwg.mxu0
      %1902 = vmatpush.bf16.msra.mxu0 0
      %1903 = vmatpush.bf16.msra.mxu0 0
      %1904 = vmatpush.bf16.msra.mxu0 0
      %1905 = vmatpush.bf16.msra.mxu0 %v1887
      %1906 = vmatpush.bf16.msra.mxu0 %v1871
      %1907 = vmatpush.bf16.msra.mxu0 %v1869
      %1908 = vmatpush.bf16.msra.mxu0 %v1867
      %1909 = vmatpush.bf16.msra.mxu0 %v1865
      %1910 = vmatmul.bf16.gmra.mxu0 %v1881
      %v1911 = vpop.f32.mrf.mxu0
      %v1912 = vadd.f32 %v1878, %v1911
      %v1913 = vpop.f32.mrf.mxu0
      %1914 = vdwg.mxu0
      %1915 = vst [vmem:[%s495] sm:$0xff] %v1899
      %1916 = vst [vmem:[%s495 + $0x8] sm:$0xff] %v1912
      %p1917 = scmp.lt.s32.totalorder %s26, 1
      %s1918 = scalar_select %p1917, %s26, 1
      %s1919 = smul.addr %s1918, 2
      %s1920 = smul.addr %s1919, 8
      %s1921 = scalar_lea.vmem %s13, %s1920
      %p1922 = scmp.lt.s32.totalorder %s26, 1
      %s1923 = scalar_select %p1922, %s26, 1
      %s1924 = smul.addr %s1923, 4
      %s1925 = smul.addr %s1924, 8
      %s1926 = scalar_lea.vmem %s14, %s1925
      // Predicated region
      $region73: #{forward_impl.1} parent=71 // pred_check
        %p1927 = pneg %p327
      $region74: #{forward_impl.1} parent=71 // pred_check_branch
        %1929 = sbr.rel (%p1927) target = $region76
      $region75: #{forward_impl.1} parent=71 // pred_region
        _
      $region76: #{forward_impl.1} parent=71 // pred_fallthru
        _
      // Predicated region
      $region77: #{forward_impl.1} parent=71 // pred_check
        %p1930 = pneg %p353
      $region78: #{forward_impl.1} parent=71 // pred_check_branch
        %1932 = sbr.rel (%p1930) target = $region80
      $region79: #{forward_impl.1} parent=71 // pred_region
        _
      $region80: #{forward_impl.1} parent=71 // pred_fallthru
        _
    $region72: #{forward_impl.1} parent=5 // pred_fallthru
      _
    %p1933 = scmp.le.s32.totalorder 2, %s21
    // Predicated region
    $region81: #{forward_impl.1} parent=5 // pred_check
      %p1934 = pneg %p1933
    $region82: #{forward_impl.1} parent=5 // pred_check_branch
      %1936 = sbr.rel (%p1934) target = $region84
    $region83: #{forward_impl.1} parent=5 // pred_region
      %s1937 = ssub.s32 %s21, 2
      // Predicated region
      $region85: #{forward_impl.1} parent=83 // pred_check
        %p1938 = pneg %p333
      $region86: #{forward_impl.1} parent=83 // pred_check_branch
        %1940 = sbr.rel (%p1938) target = $region88
      $region87: #{forward_impl.1} parent=83 // pred_region
        %p1941 = scmp.lt.s32.totalorder %s27, 1
        %s1942 = scalar_select %p1941, %s27, 1
        %s1943 = smul.addr %s1942, 2
        %s1944 = smul.addr %s1943, 8
        %s1945 = scalar_lea.vmem %s13, %s1944
      $region88: #{forward_impl.1} parent=83 // pred_fallthru
        _
      // Predicated region
      $region89: #{forward_impl.1} parent=83 // pred_check
        %p1946 = pneg %p359
      $region90: #{forward_impl.1} parent=83 // pred_check_branch
        %1948 = sbr.rel (%p1946) target = $region92
      $region91: #{forward_impl.1} parent=83 // pred_region
        %p1949 = scmp.lt.s32.totalorder %s27, 1
        %s1950 = scalar_select %p1949, %s27, 1
        %s1951 = smul.addr %s1950, 4
        %s1952 = smul.addr %s1951, 8
        %s1953 = scalar_lea.vmem %s14, %s1952
      $region92: #{forward_impl.1} parent=83 // pred_fallthru
        _
    $region84: #{forward_impl.1} parent=5 // pred_fallthru
      _
  $region6: #{forward_impl.1} parent=0 // loop_footer
    %s25 = sadd.s32 1, %s21
  $region7: #{forward_impl.1} parent=0 // loop_footer_branch
    %20 = sbr.rel target = $region3
  $region8: #{forward_impl.1} parent=0 // loop_exit
    _

</llo_original>
